<compile_context>
chip_gen: v6e
topology: v6e:2x2x1
jax: 0.10.0
libtpu: 0.0.40
codegen_flags: <defaults>
</compile_context>

<pallas_src>
import jax
import jax.numpy as jnp
from jax.experimental import pallas as pl
from jax.experimental.pallas import tpu as pltpu

BN_EPS = 1e-5
LANE = 128


def _round_up(x, m):
    return ((x + m - 1) // m) * m


def _fold_bn(gamma, beta, mean, var):
    scale = gamma / jnp.sqrt(var + BN_EPS)
    bias = beta - mean * scale
    return scale, bias


def _phase_fold_weight(w_hwio):
    """Rewrite a stride-2 3x3 conv weight (3,3,Cin,Co) as a stride-1 2x2 conv
    weight (2,2,4*Cin,Co) acting on the 2x2 phase-folded input
    (folded channel layout: (2*a + b)*Cin + c for spatial phase (a, b))."""
    cin, co = w_hwio.shape[2], w_hwio.shape[3]
    w_eff = jnp.zeros((2, 2, 4 * cin, co), w_hwio.dtype)
    for dy in range(3):
        ku, a = (0, 1) if dy == 0 else (1, (dy - 1) % 2)
        for dx in range(3):
            kv, b = (0, 1) if dx == 0 else (1, (dx - 1) % 2)
            ch = (2 * a + b) * cin
            w_eff = w_eff.at[ku, kv, ch:ch + cin, :].add(w_hwio[dy, dx])
    return w_eff


# ----------------------------- VMEM sizing helpers ----------------------------

def _vmem_bytes_estimate(TH, Ho, Wo, Ce, Cin, C1p, C2p, KH, KW, has_projection):
    f32, bf16 = 4, 2
    R2 = TH + 2
    x_blk = Ho * Wo * Ce * f32 * 2                      # double-buffered input image
    out_blk = TH * Wo * C2p * f32 * 2                   # double-buffered output tile
    weights = (KH * KW * Ce * C1p + 9 * C1p * C2p) * bf16
    if has_projection:
        weights += Cin * C2p * bf16
    biases = 3 * C2p * f32
    pad1 = (TH + KH + 1) * (Wo + KW - 1) * Ce * bf16    # conv1 padded-input scratch
    pad2 = R2 * (Wo + 2) * C1p * bf16                   # conv2 padded-input scratch
    temps = (R2 * Wo * (C1p * f32 + C1p * bf16 + KW * Ce * bf16)
             + TH * Wo * (C2p * f32 + 3 * C1p * bf16))  # accumulators / slabs / h1
    return x_blk + out_blk + weights + biases + pad1 + pad2 + temps


def _choose_row_tile(Ho, Wo, Ce, Cin, C1p, C2p, KH, KW, has_projection,
                     budget_bytes=12 << 20):
    cands = [d for d in range(Ho, 0, -1) if Ho % d == 0 and d >= min(2, Ho)]
    for th in cands:
        if _vmem_bytes_estimate(th, Ho, Wo, Ce, Cin, C1p, C2p, KH, KW,
                                has_projection) <= budget_bytes:
            return th
    return cands[-1]


# ------------------------------ Pallas kernel ---------------------------------

def _make_block_kernel(*, TH, Wo, Ce, Cin, KH, KW, C1p, C2p, has_projection):
    """Fused: conv1(KHxKW)+bias+relu -> conv2(3x3)+bias -> +shortcut -> relu,
    for TH output rows per grid step (with in-kernel halo handling)."""
    PL = 1                       # left zero-pad columns (3x3 and folded 2x2 conv)
    PR = KW - 1 - PL             # right zero-pad columns (1 for 3x3, 0 for 2x2)
    BOT = KH - 1                 # bottom halo rows of the conv1 input tile
    N1 = TH + KH + 1             # conv1 padded-input rows (h1 halo of 1 row/side)
    W1 = Wo + KW - 1             # conv1 padded-input cols
    R2 = TH + 2                  # h1 rows produced (output rows + 1 halo each side)
    M1 = R2 * Wo
    M2 = TH * Wo
    bf16 = jnp.bfloat16

    if not has_projection:
        assert Ce == C2p, "identity path requires lane-padded Cin == lane-padded Cout"

    def kernel(*refs):
        if has_projection:
            (x_ref, w1_ref, b1_ref, w2_ref, b2_ref, wsc_ref, bsc_ref,
             out_ref, xpad1_ref, xpad2_ref) = refs
        else:
            (x_ref, w1_ref, b1_ref, w2_ref, b2_ref,
             out_ref, xpad1_ref, xpad2_ref) = refs

        t = pl.program_id(1)
        n_t = pl.num_programs(1)
        r0 = pl.multiple_of(t * TH, TH)          # first output row of this tile

        # ---- conv1 padded input tile (bf16); row i <-> x row r0-2+i, col j <-> x col j-1
        # Only the halo strips are zeroed; the interior is overwritten by the copy.
        xpad1_ref[:, 0:PL, :] = jnp.zeros((N1, PL, Ce), bf16)
        if PR:
            xpad1_ref[:, PL + Wo:PL + Wo + PR, :] = jnp.zeros((N1, PR, Ce), bf16)
        xpad1_ref[2:2 + TH, PL:PL + Wo, :] = x_ref[pl.ds(r0, TH), :, :].astype(bf16)

        @pl.when(t == 0)                          # rows above the image -> zeros
        def _():
            xpad1_ref[0:2, :, :] = jnp.zeros((2, W1, Ce), bf16)

        @pl.when(t > 0)                           # halo rows from the previous tile
        def _():
            xpad1_ref[0:2, PL:PL + Wo, :] = x_ref[pl.ds(r0 - 2, 2), :, :].astype(bf16)

        @pl.when(t == n_t - 1)                    # rows below the image -> zeros
        def _():
            xpad1_ref[TH + 2:TH + 2 + BOT, :, :] = jnp.zeros((BOT, W1, Ce), bf16)

        @pl.when(t < n_t - 1)                     # halo rows from the next tile
        def _():
            xpad1_ref[TH + 2:TH + 2 + BOT, PL:PL + Wo, :] = \
                x_ref[pl.ds(r0 + TH, BOT), :, :].astype(bf16)

        # ---- conv1 (BN1 scale folded) + bias + ReLU -------------------------
        # One MXU pass per ky with K = KW*Ce (kx taps folded into the contraction).
        acc1 = jnp.zeros((M1, C1p), jnp.float32)
        for ky in range(KH):
            slab = jnp.concatenate(
                [xpad1_ref[ky:ky + R2, kx:kx + Wo, :] for kx in range(KW)], axis=-1)
            acc1 = acc1 + jnp.dot(slab.reshape(M1, KW * Ce), w1_ref[ky],
                                  preferred_element_type=jnp.float32)
        h1 = jnp.maximum(acc1 + b1_ref[...], 0.0).astype(bf16)

        # ---- conv2 padded input tile; row i <-> h1 row r0-1+i, col j <-> col j-1
        xpad2_ref[:, 0:1, :] = jnp.zeros((R2, 1, C1p), bf16)
        xpad2_ref[:, 1 + Wo:2 + Wo, :] = jnp.zeros((R2, 1, C1p), bf16)
        xpad2_ref[:, 1:1 + Wo, :] = h1.reshape(R2, Wo, C1p)

        @pl.when(t == 0)                          # conv2 top zero-padding row
        def _():
            xpad2_ref[0:1, :, :] = jnp.zeros((1, Wo + 2, C1p), bf16)

        @pl.when(t == n_t - 1)                    # conv2 bottom zero-padding row
        def _():
            xpad2_ref[R2 - 1:R2, :, :] = jnp.zeros((1, Wo + 2, C1p), bf16)

        # ---- shortcut initializes the conv2 accumulator (fused epilogue) ----
        x_rows = x_ref[pl.ds(r0, TH), :, :]                       # (TH, Wo, Ce) f32
        if has_projection:
            # 1x1 projection: contract only the first Cin (phase-(0,0)) channels.
            xs = x_rows[:, :, 0:Cin].astype(bf16).reshape(M2, Cin)
            acc2 = jnp.dot(xs, wsc_ref[...],
                           preferred_element_type=jnp.float32) + bsc_ref[...]
        else:
            # identity: exact f32 skip-add of the lane-padded input.
            acc2 = x_rows.reshape(M2, Ce)

        # ---- conv2 (BN2 scale folded) ---------------------------------------
        for ky in range(3):
            slab = jnp.concatenate(
                [xpad2_ref[ky:ky + TH, kx:kx + Wo, :] for kx in range(3)], axis=-1)
            acc2 = acc2 + jnp.dot(slab.reshape(M2, 3 * C1p), w2_ref[ky],
                                  preferred_element_type=jnp.float32)

        out_ref[...] = jnp.maximum(acc2 + b2_ref[...], 0.0).reshape(TH, Wo, C2p)

    return kernel


# ------------------------------- JAX wrapper -----------------------------------

def residual_block_forward(x_nchw, params, *, stride, row_tile=None):
    """Pallas TPU implementation of ResidualBlock.forward (eval-mode BN).

    Input/output are NCHW float32 to match the PyTorch module interface."""
    if stride not in (1, 2):
        raise NotImplementedError("only stride 1 or 2 supported")

    x = jnp.transpose(x_nchw, (0, 2, 3, 1)).astype(jnp.float32)     # NHWC f32
    N, H, W, Cin = x.shape

    w1 = jnp.transpose(params["w1_oihw"], (2, 3, 1, 0))             # (3,3,Cin,Cout)
    w2 = jnp.transpose(params["w2_oihw"], (2, 3, 1, 0))             # (3,3,Cout,Cout)
    Cout = w1.shape[-1]
    C1p = _round_up(Cout, LANE)
    C2p = _round_up(Cout, LANE)
    has_projection = (stride != 1) or (Cin != Cout)

    # ---- fold eval-mode BN into weights/biases, lane-pad output channels ----
    s1, b1 = _fold_bn(params["bn1_gamma"], params["bn1_beta"],
                      params["bn1_mean"], params["bn1_var"])
    s2, b2 = _fold_bn(params["bn2_gamma"], params["bn2_beta"],
                      params["bn2_mean"], params["bn2_var"])
    w1f = jnp.pad(w1 * s1, ((0, 0), (0, 0), (0, 0), (0, C1p - Cout)))
    w2f = jnp.pad(w2 * s2, ((0, 0), (0, 0), (0, C1p - Cout), (0, C2p - Cout)))
    b1p = jnp.pad(b1, (0, C1p - Cout)).reshape(1, C1p).astype(jnp.float32)
    b2p = jnp.pad(b2, (0, C2p - Cout)).reshape(1, C2p).astype(jnp.float32)

    # ---- stride handling: fold stride-2 into a 2x2 phase decomposition ------
    if stride == 1:
        Ho, Wo, Ce, KH, KW = H, W, Cin, 3, 3
        x_eff = x
        w1_eff = w1f                                                 # (3,3,Cin,C1p)
    else:
        assert H % 2 == 0 and W % 2 == 0, "stride-2 path requires even H, W"
        Ho, Wo = H // 2, W // 2
        Ce, KH, KW = 4 * Cin, 2, 2
        x_eff = jnp.transpose(x.reshape(N, Ho, 2, Wo, 2, Cin),
                              (0, 1, 3, 2, 4, 5)).reshape(N, Ho, Wo, Ce)
        w1_eff = _phase_fold_weight(w1f)                             # (2,2,4Cin,C1p)

    # ---- lane-pad the conv1 input channels so every in-kernel concat/store is
    #      lane-aligned and the MXU operands are dense ------------------------
    Cep = _round_up(Ce, LANE)
    if Cep > Ce:
        x_eff = jnp.pad(x_eff, ((0, 0), (0, 0), (0, 0), (0, Cep - Ce)))
        w1_eff = jnp.pad(w1_eff, ((0, 0), (0, 0), (0, Cep - Ce), (0, 0)))
    Ce = Cep

    # kx taps folded into the matmul contraction (K = KW*Ce / 3*C1p)
    w1_eff = w1_eff.reshape(KH, KW * Ce, C1p).astype(jnp.bfloat16)
    w2f = w2f.reshape(3, 3 * C1p, C2p).astype(jnp.bfloat16)

    operands = [x_eff, w1_eff, b1p, w2f, b2p]
    if has_projection:
        ssc, bsc = _fold_bn(params["bn_sc_gamma"], params["bn_sc_beta"],
                            params["bn_sc_mean"], params["bn_sc_var"])
        wsc = jnp.transpose(params["w_sc_oihw"][:, :, 0, 0], (1, 0)) * ssc
        wsc = jnp.pad(wsc, ((0, 0), (0, C2p - Cout))).astype(jnp.bfloat16)   # (Cin,C2p)
        bscp = jnp.pad(bsc, (0, C2p - Cout)).reshape(1, C2p).astype(jnp.float32)
        operands += [wsc, bscp]

    # ---- row tiling + VMEM budget -------------------------------------------
    if row_tile is None:
        TH = _choose_row_tile(Ho, Wo, Ce, Cin, C1p, C2p, KH, KW, has_projection)
    else:
        TH = int(row_tile)
    if Ho % TH != 0 or TH < min(2, Ho):
        raise ValueError(f"row_tile={TH} must divide Ho={Ho} and be >= 2")
    n_th = Ho // TH

    est = _vmem_bytes_estimate(TH, Ho, Wo, Ce, Cin, C1p, C2p, KH, KW, has_projection)
    vmem_limit = int(min(max(est + (4 << 20), 16 << 20), 100 << 20))

    kernel = _make_block_kernel(TH=TH, Wo=Wo, Ce=Ce, Cin=Cin, KH=KH, KW=KW,
                                C1p=C1p, C2p=C2p, has_projection=has_projection)

    def _const(shape):
        zeros = (0,) * len(shape)
        return pl.BlockSpec(shape, lambda n, t, _z=zeros: _z,
                            pipeline_mode=pl.Buffered(1))   # grid-invariant: 1 buffer

    in_specs = [
        pl.BlockSpec((None, Ho, Wo, Ce), lambda n, t: (n, 0, 0, 0)),
        _const((KH, KW * Ce, C1p)),
        _const((1, C1p)),
        _const((3, 3 * C1p, C2p)),
        _const((1, C2p)),
    ]
    if has_projection:
        in_specs += [_const((Cin, C2p)), _const((1, C2p))]

    out = pl.pallas_call(
        kernel,
        out_shape=jax.ShapeDtypeStruct((N, Ho, Wo, C2p), jnp.float32),
        grid=(N, n_th),
        in_specs=in_specs,
        out_specs=pl.BlockSpec((None, TH, Wo, C2p), lambda n, t: (n, t, 0, 0)),
        scratch_shapes=[
            pltpu.VMEM((TH + KH + 1, Wo + KW - 1, Ce), jnp.bfloat16),
            pltpu.VMEM((TH + 2, Wo + 2, C1p), jnp.bfloat16),
        ],
        compiler_params=pltpu.CompilerParams(
            dimension_semantics=("parallel", "parallel"),
            vmem_limit_bytes=vmem_limit),
    )(*operands)

    out = out[..., :Cout]                       # drop lane padding
    return jnp.transpose(out, (0, 3, 1, 2))     # back to NCHW


# ----------------------------- pure-JAX reference ------------------------------

def _ref_conv(x, w_oihw, stride, pad):
    return jax.lax.conv_general_dilated(
        x, w_oihw, (stride, stride), ((pad, pad), (pad, pad)),
        dimension_numbers=("NCHW", "OIHW", "NCHW"))


def _ref_bn(x, gamma, beta, mean, var):
    s = gamma / jnp.sqrt(var + BN_EPS)
    b = beta - mean * s
    return x * s[None, :, None, None] + b[None, :, None, None]


def residual_block_reference(x, params, *, stride):
    in_c = x.shape[1]
    out_c = params["w1_oihw"].shape[0]
    out = jax.nn.relu(_ref_bn(_ref_conv(x, params["w1_oihw"], stride, 1),
                              params["bn1_gamma"], params["bn1_beta"],
                              params["bn1_mean"], params["bn1_var"]))
    out = _ref_bn(_ref_conv(out, params["w2_oihw"], 1, 1),
                  params["bn2_gamma"], params["bn2_beta"],
                  params["bn2_mean"], params["bn2_var"])
    if stride != 1 or in_c != out_c:
        sc = _ref_bn(_ref_conv(x, params["w_sc_oihw"], stride, 0),
                     params["bn_sc_gamma"], params["bn_sc_beta"],
                     params["bn_sc_mean"], params["bn_sc_var"])
    else:
        sc = x
    return jax.nn.relu(out + sc)


# ------------------------------------ main -------------------------------------

def make_params(key, in_c, out_c):
    ks = jax.random.split(key, 15)
    p = {}
    p["w1_oihw"] = jax.random.normal(ks[0], (out_c, in_c, 3, 3), jnp.float32) * 0.1
    p["w2_oihw"] = jax.random.normal(ks[1], (out_c, out_c, 3, 3), jnp.float32) * 0.1
    p["w_sc_oihw"] = jax.random.normal(ks[2], (out_c, in_c, 1, 1), jnp.float32) * 0.1
    idx = 3
    for name in ("bn1", "bn2", "bn_sc"):
        p[f"{name}_gamma"] = 0.5 + jax.random.uniform(ks[idx], (out_c,), jnp.float32); idx += 1
        p[f"{name}_beta"] = jax.random.normal(ks[idx], (out_c,), jnp.float32) * 0.1; idx += 1
        p[f"{name}_mean"] = jax.random.normal(ks[idx], (out_c,), jnp.float32) * 0.1; idx += 1
        p[f"{name}_var"] = 0.5 + jax.random.uniform(ks[idx], (out_c,), jnp.float32); idx += 1
    return p


if __name__ == "__main__":
    key = jax.random.PRNGKey(0)
    k_x, k_p, k_x2, k_p2 = jax.random.split(key, 4)

    fwd = jax.jit(residual_block_forward, static_argnames=("stride", "row_tile"))

    # Case 1: stride-2 projection shortcut, 2 row tiles (exercises the halo logic).
    N, IN_C, OUT_C, H, W, STRIDE = 2, 4, 8, 16, 16, 2
    x = jax.random.normal(k_x, (N, IN_C, H, W), jnp.float32)
    params = make_params(k_p, IN_C, OUT_C)
    out = jax.block_until_ready(fwd(x, params, stride=STRIDE, row_tile=4))
    ref = jax.block_until_ready(residual_block_reference(x, params, stride=STRIDE))
    assert out.shape == ref.shape == (N, OUT_C, H // STRIDE, W // STRIDE), out.shape
    err = jnp.abs(out - ref)
    tol = 5e-2 + 5e-2 * jnp.abs(ref)   # bf16 matmul inputs vs f32 reference
    if not bool(jnp.all(err <= tol)):
        raise AssertionError(
            f"stride-2 mismatch vs reference: max abs err = {float(jnp.max(err))}")

    # Case 2: stride-1 identity shortcut (in_c == out_c), 2 row tiles.
    N2, CH2, H2, W2 = 2, 8, 16, 16
    x2 = jax.random.normal(k_x2, (N2, CH2, H2, W2), jnp.float32)
    params2 = make_params(k_p2, CH2, CH2)
    out2 = jax.block_until_ready(fwd(x2, params2, stride=1, row_tile=8))
    ref2 = jax.block_until_ready(residual_block_reference(x2, params2, stride=1))
    assert out2.shape == ref2.shape == (N2, CH2, H2, W2), out2.shape
    err2 = jnp.abs(out2 - ref2)
    tol2 = 5e-2 + 5e-2 * jnp.abs(ref2)
    if not bool(jnp.all(err2 <= tol2)):
        raise AssertionError(
            f"stride-1 mismatch vs reference: max abs err = {float(jnp.max(err2))}")

    print("KERNEL_OK")
</pallas_src>

<mosaic_0001>
module attributes {stable_mosaic.version = 11 : i64} {
  func.func @kernel(%arg0: i32, %arg1: i32, %arg2: memref<1x8x8x128xf32, #tpu.memory_space<vmem>>, %arg3: memref<2x256x128xbf16, #tpu.memory_space<vmem>>, %arg4: memref<1x128xf32, #tpu.memory_space<vmem>>, %arg5: memref<3x384x128xbf16, #tpu.memory_space<vmem>>, %arg6: memref<1x128xf32, #tpu.memory_space<vmem>>, %arg7: memref<4x128xbf16, #tpu.memory_space<vmem>>, %arg8: memref<1x128xf32, #tpu.memory_space<vmem>>, %arg9: memref<1x4x8x128xf32, #tpu.memory_space<vmem>>, %arg10: memref<7x9x128xbf16, #tpu.memory_space<vmem>>, %arg11: memref<6x10x128xbf16, #tpu.memory_space<vmem>>) attributes {dimension_semantics = [#tpu.dimension_semantics<parallel>, #tpu.dimension_semantics<parallel>], iteration_bounds = array<i64: 2, 2>, scalar_prefetch = 0 : i64, scratch_operands = 2 : i64, tpu.core_type = #tpu.core_type<tc>, window_params = [{transform_indices = @transform_0, window_bounds = array<i64: 1, 8, 8, 128>}, {pipeline_mode = #tpu.pipeline_mode<synchronous>, transform_indices = @transform_1, window_bounds = array<i64: 2, 256, 128>}, {pipeline_mode = #tpu.pipeline_mode<synchronous>, transform_indices = @transform_2, window_bounds = array<i64: 1, 128>}, {pipeline_mode = #tpu.pipeline_mode<synchronous>, transform_indices = @transform_3, window_bounds = array<i64: 3, 384, 128>}, {pipeline_mode = #tpu.pipeline_mode<synchronous>, transform_indices = @transform_4, window_bounds = array<i64: 1, 128>}, {pipeline_mode = #tpu.pipeline_mode<synchronous>, transform_indices = @transform_5, window_bounds = array<i64: 4, 128>}, {pipeline_mode = #tpu.pipeline_mode<synchronous>, transform_indices = @transform_6, window_bounds = array<i64: 1, 128>}, {transform_indices = @transform_7, window_bounds = array<i64: 1, 4, 8, 128>}]} {
    %c4_i32 = arith.constant 4 : i32
    %0 = arith.muli %arg1, %c4_i32 : i32
    %1 = tpu.assume_multiple %0, 4 : i32
    %cst = arith.constant 0.000000e+00 : bf16
    %2 = vector.broadcast %cst : bf16 to vector<7x1x128xbf16>
    %c0 = arith.constant 0 : index
    %c0_0 = arith.constant 0 : index
    %c0_1 = arith.constant 0 : index
    %3 = vector.load %arg10[%c0, %c0_0, %c0_1] : memref<7x9x128xbf16, #tpu.memory_space<vmem>>, vector<7x1x128xbf16>
    tpu.vector_store %arg10[%c0, %c0_0, %c0_1], %2 {strides = array<i32>} : memref<7x9x128xbf16, #tpu.memory_space<vmem>>, vector<7x1x128xbf16>,
    %c0_2 = arith.constant 0 : index
    %4 = arith.index_cast %1 : i32 to index
    %c0_3 = arith.constant 0 : index
    %c0_4 = arith.constant 0 : index
    %5 = vector.load %arg2[%c0_2, %4, %c0_3, %c0_4] : memref<1x8x8x128xf32, #tpu.memory_space<vmem>>, vector<1x4x8x128xf32>
    %6 = vector.shape_cast %5 : vector<1x4x8x128xf32> to vector<4x8x128xf32>
    %7 = arith.truncf %6 : vector<4x8x128xf32> to vector<4x8x128xbf16>
    %c2 = arith.constant 2 : index
    %c1 = arith.constant 1 : index
    %c0_5 = arith.constant 0 : index
    %8 = vector.load %arg10[%c2, %c1, %c0_5] : memref<7x9x128xbf16, #tpu.memory_space<vmem>>, vector<4x8x128xbf16>
    tpu.vector_store %arg10[%c2, %c1, %c0_5], %7 {strides = array<i32>} : memref<7x9x128xbf16, #tpu.memory_space<vmem>>, vector<4x8x128xbf16>,
    %c0_i32 = arith.constant 0 : i32
    %9 = arith.cmpi eq, %arg1, %c0_i32 : i32
    %10 = arith.extui %9 : i1 to i32
    %c0_i32_6 = arith.constant 0 : i32
    %11 = arith.cmpi ne, %10, %c0_i32_6 : i32
    scf.if %11 {
      %cst_104 = arith.constant 0.000000e+00 : bf16
      %103 = vector.broadcast %cst_104 : bf16 to vector<2x9x128xbf16>
      %c0_105 = arith.constant 0 : index
      %c0_106 = arith.constant 0 : index
      %c0_107 = arith.constant 0 : index
      %104 = vector.load %arg10[%c0_105, %c0_106, %c0_107] : memref<7x9x128xbf16, #tpu.memory_space<vmem>>, vector<2x9x128xbf16>
      tpu.vector_store %arg10[%c0_105, %c0_106, %c0_107], %103 {strides = array<i32>} : memref<7x9x128xbf16, #tpu.memory_space<vmem>>, vector<2x9x128xbf16>,
    } else {
    }
    %c0_i32_7 = arith.constant 0 : i32
    %12 = arith.cmpi sgt, %arg1, %c0_i32_7 : i32
    %13 = arith.extui %12 : i1 to i32
    %c0_i32_8 = arith.constant 0 : i32
    %14 = arith.cmpi ne, %13, %c0_i32_8 : i32
    scf.if %14 {
      %c2_i32 = arith.constant 2 : i32
      %103 = arith.subi %1, %c2_i32 : i32
      %c0_104 = arith.constant 0 : index
      %104 = arith.index_cast %103 : i32 to index
      %c0_105 = arith.constant 0 : index
      %c0_106 = arith.constant 0 : index
      %105 = vector.load %arg2[%c0_104, %104, %c0_105, %c0_106] : memref<1x8x8x128xf32, #tpu.memory_space<vmem>>, vector<1x2x8x128xf32>
      %106 = vector.shape_cast %105 : vector<1x2x8x128xf32> to vector<2x8x128xf32>
      %107 = arith.truncf %106 : vector<2x8x128xf32> to vector<2x8x128xbf16>
      %c0_107 = arith.constant 0 : index
      %c1_108 = arith.constant 1 : index
      %c0_109 = arith.constant 0 : index
      %108 = vector.load %arg10[%c0_107, %c1_108, %c0_109] : memref<7x9x128xbf16, #tpu.memory_space<vmem>>, vector<2x8x128xbf16>
      tpu.vector_store %arg10[%c0_107, %c1_108, %c0_109], %107 {strides = array<i32>} : memref<7x9x128xbf16, #tpu.memory_space<vmem>>, vector<2x8x128xbf16>,
    } else {
    }
    %c1_i32 = arith.constant 1 : i32
    %15 = arith.cmpi eq, %arg1, %c1_i32 : i32
    %16 = arith.extui %15 : i1 to i32
    %c0_i32_9 = arith.constant 0 : i32
    %17 = arith.cmpi ne, %16, %c0_i32_9 : i32
    scf.if %17 {
      %cst_104 = arith.constant 0.000000e+00 : bf16
      %103 = vector.broadcast %cst_104 : bf16 to vector<1x9x128xbf16>
      %c6 = arith.constant 6 : index
      %c0_105 = arith.constant 0 : index
      %c0_106 = arith.constant 0 : index
      %104 = vector.load %arg10[%c6, %c0_105, %c0_106] : memref<7x9x128xbf16, #tpu.memory_space<vmem>>, vector<1x9x128xbf16>
      tpu.vector_store %arg10[%c6, %c0_105, %c0_106], %103 {strides = array<i32>} : memref<7x9x128xbf16, #tpu.memory_space<vmem>>, vector<1x9x128xbf16>,
    } else {
    }
    %c1_i32_10 = arith.constant 1 : i32
    %18 = arith.cmpi slt, %arg1, %c1_i32_10 : i32
    %19 = arith.extui %18 : i1 to i32
    %c0_i32_11 = arith.constant 0 : i32
    %20 = arith.cmpi ne, %19, %c0_i32_11 : i32
    scf.if %20 {
      %c4_i32_104 = arith.constant 4 : i32
      %103 = arith.addi %1, %c4_i32_104 : i32
      %c0_105 = arith.constant 0 : index
      %104 = arith.index_cast %103 : i32 to index
      %c0_106 = arith.constant 0 : index
      %c0_107 = arith.constant 0 : index
      %105 = vector.load %arg2[%c0_105, %104, %c0_106, %c0_107] : memref<1x8x8x128xf32, #tpu.memory_space<vmem>>, vector<1x1x8x128xf32>
      %106 = vector.shape_cast %105 : vector<1x1x8x128xf32> to vector<1x8x128xf32>
      %107 = arith.truncf %106 : vector<1x8x128xf32> to vector<1x8x128xbf16>
      %c6 = arith.constant 6 : index
      %c1_108 = arith.constant 1 : index
      %c0_109 = arith.constant 0 : index
      %108 = vector.load %arg10[%c6, %c1_108, %c0_109] : memref<7x9x128xbf16, #tpu.memory_space<vmem>>, vector<1x8x128xbf16>
      tpu.vector_store %arg10[%c6, %c1_108, %c0_109], %107 {strides = array<i32>} : memref<7x9x128xbf16, #tpu.memory_space<vmem>>, vector<1x8x128xbf16>,
    } else {
    }
    %cst_12 = arith.constant 0.000000e+00 : f32
    %21 = vector.broadcast %cst_12 : f32 to vector<48x128xf32>
    %c0_13 = arith.constant 0 : index
    %c0_14 = arith.constant 0 : index
    %c0_15 = arith.constant 0 : index
    %22 = vector.load %arg10[%c0_13, %c0_14, %c0_15] : memref<7x9x128xbf16, #tpu.memory_space<vmem>>, vector<6x8x128xbf16>
    %c0_16 = arith.constant 0 : index
    %c1_17 = arith.constant 1 : index
    %c0_18 = arith.constant 0 : index
    %23 = vector.load %arg10[%c0_16, %c1_17, %c0_18] : memref<7x9x128xbf16, #tpu.memory_space<vmem>>, vector<6x8x128xbf16>
    %24 = tpu.concatenate %22, %23 in 2 : vector<6x8x128xbf16>, vector<6x8x128xbf16> -> vector<6x8x256xbf16>
    %25 = vector.shape_cast %24 : vector<6x8x256xbf16> to vector<48x256xbf16>
    %c0_19 = arith.constant 0 : index
    %c0_20 = arith.constant 0 : index
    %c0_21 = arith.constant 0 : index
    %26 = vector.load %arg3[%c0_19, %c0_20, %c0_21] : memref<2x256x128xbf16, #tpu.memory_space<vmem>>, vector<1x256x128xbf16>
    %27 = vector.shape_cast %26 : vector<1x256x128xbf16> to vector<256x128xbf16>
    %cst_22 = arith.constant dense<0.000000e+00> : vector<48x128xf32>
    %28 = tpu.matmul %25, %27, %cst_22 {dimension_numbers = #tpu.dot_dimension_numbers<[1], [0], [0], [1], [0, 0, 1, 1], [], []>} : vector<48x256xbf16>, vector<256x128xbf16>, vector<48x128xf32> -> vector<48x128xf32>
    %29 = arith.addf %21, %28 : vector<48x128xf32>
    %c1_23 = arith.constant 1 : index
    %c0_24 = arith.constant 0 : index
    %c0_25 = arith.constant 0 : index
    %30 = vector.load %arg10[%c1_23, %c0_24, %c0_25] : memref<7x9x128xbf16, #tpu.memory_space<vmem>>, vector<6x8x128xbf16>
    %c1_26 = arith.constant 1 : index
    %c1_27 = arith.constant 1 : index
    %c0_28 = arith.constant 0 : index
    %31 = vector.load %arg10[%c1_26, %c1_27, %c0_28] : memref<7x9x128xbf16, #tpu.memory_space<vmem>>, vector<6x8x128xbf16>
    %32 = tpu.concatenate %30, %31 in 2 : vector<6x8x128xbf16>, vector<6x8x128xbf16> -> vector<6x8x256xbf16>
    %33 = vector.shape_cast %32 : vector<6x8x256xbf16> to vector<48x256xbf16>
    %c1_29 = arith.constant 1 : index
    %c0_30 = arith.constant 0 : index
    %c0_31 = arith.constant 0 : index
    %34 = vector.load %arg3[%c1_29, %c0_30, %c0_31] : memref<2x256x128xbf16, #tpu.memory_space<vmem>>, vector<1x256x128xbf16>
    %35 = vector.shape_cast %34 : vector<1x256x128xbf16> to vector<256x128xbf16>
    %cst_32 = arith.constant dense<0.000000e+00> : vector<48x128xf32>
    %36 = tpu.matmul %33, %35, %cst_32 {dimension_numbers = #tpu.dot_dimension_numbers<[1], [0], [0], [1], [0, 0, 1, 1], [], []>} : vector<48x256xbf16>, vector<256x128xbf16>, vector<48x128xf32> -> vector<48x128xf32>
    %37 = arith.addf %29, %36 : vector<48x128xf32>
    %c0_33 = arith.constant 0 : index
    %c0_34 = arith.constant 0 : index
    %38 = vector.load %arg4[%c0_33, %c0_34] : memref<1x128xf32, #tpu.memory_space<vmem>>, vector<1x128xf32>
    %39 = vector.broadcast %38 : vector<1x128xf32> to vector<48x128xf32>
    %40 = arith.addf %37, %39 : vector<48x128xf32>
    %cst_35 = arith.constant 0.000000e+00 : f32
    %41 = vector.broadcast %cst_35 : f32 to vector<48x128xf32>
    %42 = arith.maximumf %40, %41 : vector<48x128xf32>
    %43 = arith.truncf %42 : vector<48x128xf32> to vector<48x128xbf16>
    %cst_36 = arith.constant 0.000000e+00 : bf16
    %44 = vector.broadcast %cst_36 : bf16 to vector<6x1x128xbf16>
    %c0_37 = arith.constant 0 : index
    %c0_38 = arith.constant 0 : index
    %c0_39 = arith.constant 0 : index
    %45 = vector.load %arg11[%c0_37, %c0_38, %c0_39] : memref<6x10x128xbf16, #tpu.memory_space<vmem>>, vector<6x1x128xbf16>
    tpu.vector_store %arg11[%c0_37, %c0_38, %c0_39], %44 {strides = array<i32>} : memref<6x10x128xbf16, #tpu.memory_space<vmem>>, vector<6x1x128xbf16>,
    %cst_40 = arith.constant 0.000000e+00 : bf16
    %46 = vector.broadcast %cst_40 : bf16 to vector<6x1x128xbf16>
    %c0_41 = arith.constant 0 : index
    %c9 = arith.constant 9 : index
    %c0_42 = arith.constant 0 : index
    %47 = vector.load %arg11[%c0_41, %c9, %c0_42] : memref<6x10x128xbf16, #tpu.memory_space<vmem>>, vector<6x1x128xbf16>
    tpu.vector_store %arg11[%c0_41, %c9, %c0_42], %46 {strides = array<i32>} : memref<6x10x128xbf16, #tpu.memory_space<vmem>>, vector<6x1x128xbf16>,
    %48 = vector.shape_cast %43 : vector<48x128xbf16> to vector<6x8x128xbf16>
    %c0_43 = arith.constant 0 : index
    %c1_44 = arith.constant 1 : index
    %c0_45 = arith.constant 0 : index
    %49 = vector.load %arg11[%c0_43, %c1_44, %c0_45] : memref<6x10x128xbf16, #tpu.memory_space<vmem>>, vector<6x8x128xbf16>
    tpu.vector_store %arg11[%c0_43, %c1_44, %c0_45], %48 {strides = array<i32>} : memref<6x10x128xbf16, #tpu.memory_space<vmem>>, vector<6x8x128xbf16>,
    %c0_i32_46 = arith.constant 0 : i32
    %50 = arith.cmpi eq, %arg1, %c0_i32_46 : i32
    %51 = arith.extui %50 : i1 to i32
    %c0_i32_47 = arith.constant 0 : i32
    %52 = arith.cmpi ne, %51, %c0_i32_47 : i32
    scf.if %52 {
      %cst_104 = arith.constant 0.000000e+00 : bf16
      %103 = vector.broadcast %cst_104 : bf16 to vector<1x10x128xbf16>
      %c0_105 = arith.constant 0 : index
      %c0_106 = arith.constant 0 : index
      %c0_107 = arith.constant 0 : index
      %104 = vector.load %arg11[%c0_105, %c0_106, %c0_107] : memref<6x10x128xbf16, #tpu.memory_space<vmem>>, vector<1x10x128xbf16>
      tpu.vector_store %arg11[%c0_105, %c0_106, %c0_107], %103 {strides = array<i32>} : memref<6x10x128xbf16, #tpu.memory_space<vmem>>, vector<1x10x128xbf16>,
    } else {
    }
    %c1_i32_48 = arith.constant 1 : i32
    %53 = arith.cmpi eq, %arg1, %c1_i32_48 : i32
    %54 = arith.extui %53 : i1 to i32
    %c0_i32_49 = arith.constant 0 : i32
    %55 = arith.cmpi ne, %54, %c0_i32_49 : i32
    scf.if %55 {
      %cst_104 = arith.constant 0.000000e+00 : bf16
      %103 = vector.broadcast %cst_104 : bf16 to vector<1x10x128xbf16>
      %c5 = arith.constant 5 : index
      %c0_105 = arith.constant 0 : index
      %c0_106 = arith.constant 0 : index
      %104 = vector.load %arg11[%c5, %c0_105, %c0_106] : memref<6x10x128xbf16, #tpu.memory_space<vmem>>, vector<1x10x128xbf16>
      tpu.vector_store %arg11[%c5, %c0_105, %c0_106], %103 {strides = array<i32>} : memref<6x10x128xbf16, #tpu.memory_space<vmem>>, vector<1x10x128xbf16>,
    } else {
    }
    %c0_50 = arith.constant 0 : index
    %56 = arith.index_cast %1 : i32 to index
    %c0_51 = arith.constant 0 : index
    %c0_52 = arith.constant 0 : index
    %57 = vector.load %arg2[%c0_50, %56, %c0_51, %c0_52] : memref<1x8x8x128xf32, #tpu.memory_space<vmem>>, vector<1x4x8x128xf32>
    %58 = vector.shape_cast %57 : vector<1x4x8x128xf32> to vector<4x8x128xf32>
    %59 = vector.extract_strided_slice %58 {offsets = [0, 0, 0], sizes = [4, 8, 4], strides = [1, 1, 1]} : vector<4x8x128xf32> to vector<4x8x4xf32>
    %60 = arith.truncf %59 : vector<4x8x4xf32> to vector<4x8x4xbf16>
    %61 = vector.shape_cast %60 : vector<4x8x4xbf16> to vector<32x4xbf16>
    %c0_53 = arith.constant 0 : index
    %c0_54 = arith.constant 0 : index
    %62 = vector.load %arg7[%c0_53, %c0_54] : memref<4x128xbf16, #tpu.memory_space<vmem>>, vector<4x128xbf16>
    %cst_55 = arith.constant dense<0.000000e+00> : vector<32x128xf32>
    %63 = tpu.matmul %61, %62, %cst_55 {dimension_numbers = #tpu.dot_dimension_numbers<[1], [0], [0], [1], [0, 0, 1, 1], [], []>} : vector<32x4xbf16>, vector<4x128xbf16>, vector<32x128xf32> -> vector<32x128xf32>
    %c0_56 = arith.constant 0 : index
    %c0_57 = arith.constant 0 : index
    %64 = vector.load %arg8[%c0_56, %c0_57] : memref<1x128xf32, #tpu.memory_space<vmem>>, vector<1x128xf32>
    %65 = vector.broadcast %64 : vector<1x128xf32> to vector<32x128xf32>
    %66 = arith.addf %63, %65 : vector<32x128xf32>
    %c0_58 = arith.constant 0 : index
    %c0_59 = arith.constant 0 : index
    %c0_60 = arith.constant 0 : index
    %67 = vector.load %arg11[%c0_58, %c0_59, %c0_60] : memref<6x10x128xbf16, #tpu.memory_space<vmem>>, vector<4x8x128xbf16>
    %c0_61 = arith.constant 0 : index
    %c1_62 = arith.constant 1 : index
    %c0_63 = arith.constant 0 : index
    %68 = vector.load %arg11[%c0_61, %c1_62, %c0_63] : memref<6x10x128xbf16, #tpu.memory_space<vmem>>, vector<4x8x128xbf16>
    %c0_64 = arith.constant 0 : index
    %c2_65 = arith.constant 2 : index
    %c0_66 = arith.constant 0 : index
    %69 = vector.load %arg11[%c0_64, %c2_65, %c0_66] : memref<6x10x128xbf16, #tpu.memory_space<vmem>>, vector<4x8x128xbf16>
    %70 = tpu.concatenate %67, %68, %69 in 2 : vector<4x8x128xbf16>, vector<4x8x128xbf16>, vector<4x8x128xbf16> -> vector<4x8x384xbf16>
    %71 = vector.shape_cast %70 : vector<4x8x384xbf16> to vector<32x384xbf16>
    %c0_67 = arith.constant 0 : index
    %c0_68 = arith.constant 0 : index
    %c0_69 = arith.constant 0 : index
    %72 = vector.load %arg5[%c0_67, %c0_68, %c0_69] : memref<3x384x128xbf16, #tpu.memory_space<vmem>>, vector<1x384x128xbf16>
    %73 = vector.shape_cast %72 : vector<1x384x128xbf16> to vector<384x128xbf16>
    %cst_70 = arith.constant dense<0.000000e+00> : vector<32x128xf32>
    %74 = tpu.matmul %71, %73, %cst_70 {dimension_numbers = #tpu.dot_dimension_numbers<[1], [0], [0], [1], [0, 0, 1, 1], [], []>} : vector<32x384xbf16>, vector<384x128xbf16>, vector<32x128xf32> -> vector<32x128xf32>
    %75 = arith.addf %66, %74 : vector<32x128xf32>
    %c1_71 = arith.constant 1 : index
    %c0_72 = arith.constant 0 : index
    %c0_73 = arith.constant 0 : index
    %76 = vector.load %arg11[%c1_71, %c0_72, %c0_73] : memref<6x10x128xbf16, #tpu.memory_space<vmem>>, vector<4x8x128xbf16>
    %c1_74 = arith.constant 1 : index
    %c1_75 = arith.constant 1 : index
    %c0_76 = arith.constant 0 : index
    %77 = vector.load %arg11[%c1_74, %c1_75, %c0_76] : memref<6x10x128xbf16, #tpu.memory_space<vmem>>, vector<4x8x128xbf16>
    %c1_77 = arith.constant 1 : index
    %c2_78 = arith.constant 2 : index
    %c0_79 = arith.constant 0 : index
    %78 = vector.load %arg11[%c1_77, %c2_78, %c0_79] : memref<6x10x128xbf16, #tpu.memory_space<vmem>>, vector<4x8x128xbf16>
    %79 = tpu.concatenate %76, %77, %78 in 2 : vector<4x8x128xbf16>, vector<4x8x128xbf16>, vector<4x8x128xbf16> -> vector<4x8x384xbf16>
    %80 = vector.shape_cast %79 : vector<4x8x384xbf16> to vector<32x384xbf16>
    %c1_80 = arith.constant 1 : index
    %c0_81 = arith.constant 0 : index
    %c0_82 = arith.constant 0 : index
    %81 = vector.load %arg5[%c1_80, %c0_81, %c0_82] : memref<3x384x128xbf16, #tpu.memory_space<vmem>>, vector<1x384x128xbf16>
    %82 = vector.shape_cast %81 : vector<1x384x128xbf16> to vector<384x128xbf16>
    %cst_83 = arith.constant dense<0.000000e+00> : vector<32x128xf32>
    %83 = tpu.matmul %80, %82, %cst_83 {dimension_numbers = #tpu.dot_dimension_numbers<[1], [0], [0], [1], [0, 0, 1, 1], [], []>} : vector<32x384xbf16>, vector<384x128xbf16>, vector<32x128xf32> -> vector<32x128xf32>
    %84 = arith.addf %75, %83 : vector<32x128xf32>
    %c2_84 = arith.constant 2 : index
    %c0_85 = arith.constant 0 : index
    %c0_86 = arith.constant 0 : index
    %85 = vector.load %arg11[%c2_84, %c0_85, %c0_86] : memref<6x10x128xbf16, #tpu.memory_space<vmem>>, vector<4x8x128xbf16>
    %c2_87 = arith.constant 2 : index
    %c1_88 = arith.constant 1 : index
    %c0_89 = arith.constant 0 : index
    %86 = vector.load %arg11[%c2_87, %c1_88, %c0_89] : memref<6x10x128xbf16, #tpu.memory_space<vmem>>, vector<4x8x128xbf16>
    %c2_90 = arith.constant 2 : index
    %c2_91 = arith.constant 2 : index
    %c0_92 = arith.constant 0 : index
    %87 = vector.load %arg11[%c2_90, %c2_91, %c0_92] : memref<6x10x128xbf16, #tpu.memory_space<vmem>>, vector<4x8x128xbf16>
    %88 = tpu.concatenate %85, %86, %87 in 2 : vector<4x8x128xbf16>, vector<4x8x128xbf16>, vector<4x8x128xbf16> -> vector<4x8x384xbf16>
    %89 = vector.shape_cast %88 : vector<4x8x384xbf16> to vector<32x384xbf16>
    %c2_93 = arith.constant 2 : index
    %c0_94 = arith.constant 0 : index
    %c0_95 = arith.constant 0 : index
    %90 = vector.load %arg5[%c2_93, %c0_94, %c0_95] : memref<3x384x128xbf16, #tpu.memory_space<vmem>>, vector<1x384x128xbf16>
    %91 = vector.shape_cast %90 : vector<1x384x128xbf16> to vector<384x128xbf16>
    %cst_96 = arith.constant dense<0.000000e+00> : vector<32x128xf32>
    %92 = tpu.matmul %89, %91, %cst_96 {dimension_numbers = #tpu.dot_dimension_numbers<[1], [0], [0], [1], [0, 0, 1, 1], [], []>} : vector<32x384xbf16>, vector<384x128xbf16>, vector<32x128xf32> -> vector<32x128xf32>
    %93 = arith.addf %84, %92 : vector<32x128xf32>
    %c0_97 = arith.constant 0 : index
    %c0_98 = arith.constant 0 : index
    %94 = vector.load %arg6[%c0_97, %c0_98] : memref<1x128xf32, #tpu.memory_space<vmem>>, vector<1x128xf32>
    %95 = vector.broadcast %94 : vector<1x128xf32> to vector<32x128xf32>
    %96 = arith.addf %93, %95 : vector<32x128xf32>
    %cst_99 = arith.constant 0.000000e+00 : f32
    %97 = vector.broadcast %cst_99 : f32 to vector<32x128xf32>
    %98 = arith.maximumf %96, %97 : vector<32x128xf32>
    %99 = vector.shape_cast %98 : vector<32x128xf32> to vector<4x8x128xf32>
    %c0_100 = arith.constant 0 : index
    %c0_101 = arith.constant 0 : index
    %c0_102 = arith.constant 0 : index
    %c0_103 = arith.constant 0 : index
    %100 = vector.load %arg9[%c0_100, %c0_101, %c0_102, %c0_103] : memref<1x4x8x128xf32, #tpu.memory_space<vmem>>, vector<1x4x8x128xf32>
    %101 = vector.shape_cast %100 : vector<1x4x8x128xf32> to vector<4x8x128xf32>
    %102 = vector.shape_cast %99 : vector<4x8x128xf32> to vector<1x4x8x128xf32>
    tpu.vector_store %arg9[%c0_100, %c0_101, %c0_102, %c0_103], %102 {strides = array<i32>} : memref<1x4x8x128xf32, #tpu.memory_space<vmem>>, vector<1x4x8x128xf32>,
    return
  }
  func.func @transform_0(%arg0: i32, %arg1: i32) -> (i32, i32, i32, i32) {
    %c0_i32 = arith.constant 0 : i32
    %c0_i32_0 = arith.constant 0 : i32
    %c0_i32_1 = arith.constant 0 : i32
    %c0_i32_2 = arith.constant 0 : i32
    return %arg0, %c0_i32, %c0_i32_0, %c0_i32_1 : i32, i32, i32, i32
  }
  func.func @transform_1(%arg0: i32, %arg1: i32) -> (i32, i32, i32) {
    %c0_i32 = arith.constant 0 : i32
    %c0_i32_0 = arith.constant 0 : i32
    %c0_i32_1 = arith.constant 0 : i32
    %c0_i32_2 = arith.constant 0 : i32
    return %c0_i32, %c0_i32_0, %c0_i32_1 : i32, i32, i32
  }
  func.func @transform_2(%arg0: i32, %arg1: i32) -> (i32, i32) {
    %c0_i32 = arith.constant 0 : i32
    %c0_i32_0 = arith.constant 0 : i32
    %c0_i32_1 = arith.constant 0 : i32
    return %c0_i32, %c0_i32_0 : i32, i32
  }
  func.func @transform_3(%arg0: i32, %arg1: i32) -> (i32, i32, i32) {
    %c0_i32 = arith.constant 0 : i32
    %c0_i32_0 = arith.constant 0 : i32
    %c0_i32_1 = arith.constant 0 : i32
    %c0_i32_2 = arith.constant 0 : i32
    return %c0_i32, %c0_i32_0, %c0_i32_1 : i32, i32, i32
  }
  func.func @transform_4(%arg0: i32, %arg1: i32) -> (i32, i32) {
    %c0_i32 = arith.constant 0 : i32
    %c0_i32_0 = arith.constant 0 : i32
    %c0_i32_1 = arith.constant 0 : i32
    return %c0_i32, %c0_i32_0 : i32, i32
  }
  func.func @transform_5(%arg0: i32, %arg1: i32) -> (i32, i32) {
    %c0_i32 = arith.constant 0 : i32
    %c0_i32_0 = arith.constant 0 : i32
    %c0_i32_1 = arith.constant 0 : i32
    return %c0_i32, %c0_i32_0 : i32, i32
  }
  func.func @transform_6(%arg0: i32, %arg1: i32) -> (i32, i32) {
    %c0_i32 = arith.constant 0 : i32
    %c0_i32_0 = arith.constant 0 : i32
    %c0_i32_1 = arith.constant 0 : i32
    return %c0_i32, %c0_i32_0 : i32, i32
  }
  func.func @transform_7(%arg0: i32, %arg1: i32) -> (i32, i32, i32, i32) {
    %c0_i32 = arith.constant 0 : i32
    %c0_i32_0 = arith.constant 0 : i32
    %c0_i32_1 = arith.constant 0 : i32
    return %arg0, %arg1, %c0_i32, %c0_i32_0 : i32, i32, i32, i32
  }
}

</mosaic_0001>

<llo_original>
// kernel: residual_block_forward.1
$region0: #{residual_block_forward.1}
  #allocation0 [shape = 'u32[]', space=smem, size = 0x4, offset = 0x4, fixed_abs, tag = 'smem constant byte address 0x4 - core index']
  #allocation1 [shape = 'u32[144,128]{1,0:T(1,128)}', space=vmem, size = 0x12000, scoped, tag = 'internal scratch']
  #allocation2 [shape = 'bf16[7,9,128]{2,1,0:T(8,128)(2,1)}', space=vmem, size = 0x7000, scoped, tag = 'scratch operand']
  #allocation3 [shape = 'bf16[6,10,128]{2,1,0:T(8,128)(2,1)}', space=vmem, size = 0x6000, scoped, tag = 'scratch operand']
  %s0 = inlined_call_operand.vmem [shape: f32[2,8,8,128], index: 0, kind: input, shape index: {}]
  %s1 = inlined_call_operand.vmem [shape: bf16[2,256,128], index: 1, kind: input, shape index: {}]
  %s2 = inlined_call_operand.vmem [shape: f32[1,128], index: 2, kind: input, shape index: {}]
  %s3 = inlined_call_operand.vmem [shape: bf16[3,384,128], index: 3, kind: input, shape index: {}]
  %s4 = inlined_call_operand.vmem [shape: f32[1,128], index: 4, kind: input, shape index: {}]
  %s5 = inlined_call_operand.vmem [shape: bf16[4,128], index: 5, kind: input, shape index: {}]
  %s6 = inlined_call_operand.vmem [shape: f32[1,128], index: 6, kind: input, shape index: {}]
  %s7 = inlined_call_operand.vmem [shape: f32[2,8,8,128], index: 7, kind: output, shape index: {}]
  %s8 = sld [smem:[#allocation0]]
  $region85: #{residual_block_forward.1} parent=0
    _
  %s10 = ssub.s32 1, %s8
  %s11 = scalar_select 0, %s10, %s8
  loop: start=0, step=1, limit=6
  $region2: #{residual_block_forward.1} parent=0 // loop_pre_header
    _
  $region3: #{residual_block_forward.1} parent=0 // loop_header
    %s13 = sphi 0, %s17
    %p14 = scmp.ge.s32.totalorder %s13, 6
    %s20 = sphi 0, %s32
    %s21 = sphi 0, %s28
    %s22 = sphi 0, %s20
    %s23 = sphi 0, %s21
    %s24 = sphi 0, %s22
    %s25 = sphi 0, %s23
    %s35 = sphi 0, %s37
    %s38 = sphi 0, %s35
    %s39 = sphi 0, %s38
    %s55 = sphi 0, %s39
    %s59 = sphi 0, %s59
    %s61 = sphi 0, %s59
    %s62 = sphi 0, %s61
    %s76 = sphi 0, %s62
    %s80 = sphi 0, %s80
    %s82 = sphi 0, %s80
    %s83 = sphi 0, %s82
    %s97 = sphi 0, %s83
    %s101 = sphi 0, %s101
    %s103 = sphi 0, %s101
    %s104 = sphi 0, %s103
    %s118 = sphi 0, %s104
    %s122 = sphi 0, %s122
    %s124 = sphi 0, %s122
    %s125 = sphi 0, %s124
    %s139 = sphi 0, %s125
    %s143 = sphi 0, %s143
    %s145 = sphi 0, %s143
    %s146 = sphi 0, %s145
    %s160 = sphi 0, %s146
    %s164 = sphi 0, %s164
    %s166 = sphi 0, %s164
    %s167 = sphi 0, %s166
    %s181 = sphi 0, %s167
    %s189 = sphi 0, %s191
    %s192 = sphi 0, %s189
    %s193 = sphi 0, %s192
    %s209 = sphi 0, %s193
  $region4: #{residual_block_forward.1} parent=0 // loop_header_branch
    %16 = sbr.rel (%p14) target = $region8
  $region5: #{residual_block_forward.1} parent=0 // loop_body
    %s18 = ssub.s32 %s13, 1
    %s19 = ssub.s32 %s13, 2
    %s26 = sadd.s32 1, %s21
    %p27 = scmp.ge.s32.totalorder %s26, 2
    %s28 = scalar_select %p27, 0, %s26
    %s29 = sadd.s32 1, %s20
    %s30 = scalar_select %p27, %s29, %s20
    %p31 = scmp.ge.s32.totalorder %s30, 2
    %s32 = scalar_select %p31, 0, %s30
    %s33 = ssub.s32 %s20, %s32
    %p34 = scmp.eq.s32.totalorder %s33, 0
    %s36 = sadd.s32 %s35, 1
    %s37 = scalar_select %p34, %s35, %s36
    %p40 = pneg %p34
    %p41 = scmp.eq.s32.totalorder %s13, 3
    %p42 = por %p40, %p41
    %p43 = scmp.ne.s32.totalorder %s35, %s38
    %p44 = scmp.eq.s32.totalorder %s13, 0
    %p45 = por %p43, %p44
    %p46 = scmp.ne.s32.totalorder %s35, %s38
    %p47 = scmp.eq.s32.totalorder %s18, 3
    %p48 = por %p46, %p47
    %p49 = scmp.ne.s32.totalorder %s38, %s39
    %p50 = scmp.eq.s32.totalorder %s18, 0
    %p51 = por %p49, %p50
    %p52 = scmp.ne.s32.totalorder %s38, %s39
    %p53 = scmp.eq.s32.totalorder %s19, 3
    %p54 = por %p52, %p53
    %p56 = scmp.ne.s32.totalorder %s39, %s55
    %p57 = scmp.eq.s32.totalorder %s19, 0
    %p58 = por %p56, %p57
    %s60 = sadd.s32 %s59, 1
    %p63 = scmp.eq.s32.totalorder %s13, 3
    %p64 = scmp.ne.s32.totalorder %s59, %s61
    %p65 = scmp.eq.s32.totalorder %s13, 0
    %p66 = por %p64, %p65
    %p67 = scmp.ne.s32.totalorder %s59, %s61
    %p68 = scmp.eq.s32.totalorder %s18, 3
    %p69 = por %p67, %p68
    %p70 = scmp.ne.s32.totalorder %s61, %s62
    %p71 = scmp.eq.s32.totalorder %s18, 0
    %p72 = por %p70, %p71
    %p73 = scmp.ne.s32.totalorder %s61, %s62
    %p74 = scmp.eq.s32.totalorder %s19, 3
    %p75 = por %p73, %p74
    %p77 = scmp.ne.s32.totalorder %s62, %s76
    %p78 = scmp.eq.s32.totalorder %s19, 0
    %p79 = por %p77, %p78
    %s81 = sadd.s32 %s80, 1
    %p84 = scmp.eq.s32.totalorder %s13, 3
    %p85 = scmp.ne.s32.totalorder %s80, %s82
    %p86 = scmp.eq.s32.totalorder %s13, 0
    %p87 = por %p85, %p86
    %p88 = scmp.ne.s32.totalorder %s80, %s82
    %p89 = scmp.eq.s32.totalorder %s18, 3
    %p90 = por %p88, %p89
    %p91 = scmp.ne.s32.totalorder %s82, %s83
    %p92 = scmp.eq.s32.totalorder %s18, 0
    %p93 = por %p91, %p92
    %p94 = scmp.ne.s32.totalorder %s82, %s83
    %p95 = scmp.eq.s32.totalorder %s19, 3
    %p96 = por %p94, %p95
    %p98 = scmp.ne.s32.totalorder %s83, %s97
    %p99 = scmp.eq.s32.totalorder %s19, 0
    %p100 = por %p98, %p99
    %s102 = sadd.s32 %s101, 1
    %p105 = scmp.eq.s32.totalorder %s13, 3
    %p106 = scmp.ne.s32.totalorder %s101, %s103
    %p107 = scmp.eq.s32.totalorder %s13, 0
    %p108 = por %p106, %p107
    %p109 = scmp.ne.s32.totalorder %s101, %s103
    %p110 = scmp.eq.s32.totalorder %s18, 3
    %p111 = por %p109, %p110
    %p112 = scmp.ne.s32.totalorder %s103, %s104
    %p113 = scmp.eq.s32.totalorder %s18, 0
    %p114 = por %p112, %p113
    %p115 = scmp.ne.s32.totalorder %s103, %s104
    %p116 = scmp.eq.s32.totalorder %s19, 3
    %p117 = por %p115, %p116
    %p119 = scmp.ne.s32.totalorder %s104, %s118
    %p120 = scmp.eq.s32.totalorder %s19, 0
    %p121 = por %p119, %p120
    %s123 = sadd.s32 %s122, 1
    %p126 = scmp.eq.s32.totalorder %s13, 3
    %p127 = scmp.ne.s32.totalorder %s122, %s124
    %p128 = scmp.eq.s32.totalorder %s13, 0
    %p129 = por %p127, %p128
    %p130 = scmp.ne.s32.totalorder %s122, %s124
    %p131 = scmp.eq.s32.totalorder %s18, 3
    %p132 = por %p130, %p131
    %p133 = scmp.ne.s32.totalorder %s124, %s125
    %p134 = scmp.eq.s32.totalorder %s18, 0
    %p135 = por %p133, %p134
    %p136 = scmp.ne.s32.totalorder %s124, %s125
    %p137 = scmp.eq.s32.totalorder %s19, 3
    %p138 = por %p136, %p137
    %p140 = scmp.ne.s32.totalorder %s125, %s139
    %p141 = scmp.eq.s32.totalorder %s19, 0
    %p142 = por %p140, %p141
    %s144 = sadd.s32 %s143, 1
    %p147 = scmp.eq.s32.totalorder %s13, 3
    %p148 = scmp.ne.s32.totalorder %s143, %s145
    %p149 = scmp.eq.s32.totalorder %s13, 0
    %p150 = por %p148, %p149
    %p151 = scmp.ne.s32.totalorder %s143, %s145
    %p152 = scmp.eq.s32.totalorder %s18, 3
    %p153 = por %p151, %p152
    %p154 = scmp.ne.s32.totalorder %s145, %s146
    %p155 = scmp.eq.s32.totalorder %s18, 0
    %p156 = por %p154, %p155
    %p157 = scmp.ne.s32.totalorder %s145, %s146
    %p158 = scmp.eq.s32.totalorder %s19, 3
    %p159 = por %p157, %p158
    %p161 = scmp.ne.s32.totalorder %s146, %s160
    %p162 = scmp.eq.s32.totalorder %s19, 0
    %p163 = por %p161, %p162
    %s165 = sadd.s32 %s164, 1
    %p168 = scmp.eq.s32.totalorder %s13, 3
    %p169 = scmp.ne.s32.totalorder %s164, %s166
    %p170 = scmp.eq.s32.totalorder %s13, 0
    %p171 = por %p169, %p170
    %p172 = scmp.ne.s32.totalorder %s164, %s166
    %p173 = scmp.eq.s32.totalorder %s18, 3
    %p174 = por %p172, %p173
    %p175 = scmp.ne.s32.totalorder %s166, %s167
    %p176 = scmp.eq.s32.totalorder %s18, 0
    %p177 = por %p175, %p176
    %p178 = scmp.ne.s32.totalorder %s166, %s167
    %p179 = scmp.eq.s32.totalorder %s19, 3
    %p180 = por %p178, %p179
    %p182 = scmp.ne.s32.totalorder %s167, %s181
    %p183 = scmp.eq.s32.totalorder %s19, 0
    %p184 = por %p182, %p183
    %s185 = ssub.s32 %s20, %s32
    %s186 = ssub.s32 %s21, %s28
    %s187 = sor.u32 %s185, %s186
    %p188 = scmp.eq.s32.totalorder %s187, 0
    %s190 = sadd.s32 %s189, 1
    %s191 = scalar_select %p188, %s189, %s190
    %p194 = pneg %p188
    %p195 = scmp.eq.s32.totalorder %s13, 3
    %p196 = por %p194, %p195
    %p197 = scmp.ne.s32.totalorder %s189, %s192
    %p198 = scmp.eq.s32.totalorder %s13, 0
    %p199 = por %p197, %p198
    %p200 = scmp.ne.s32.totalorder %s189, %s192
    %p201 = scmp.eq.s32.totalorder %s18, 3
    %p202 = por %p200, %p201
    %p203 = scmp.ne.s32.totalorder %s192, %s193
    %p204 = scmp.eq.s32.totalorder %s18, 0
    %p205 = por %p203, %p204
    %p206 = scmp.ne.s32.totalorder %s192, %s193
    %p207 = scmp.eq.s32.totalorder %s19, 3
    %p208 = por %p206, %p207
    %p210 = scmp.ne.s32.totalorder %s193, %s209
    %p211 = scmp.eq.s32.totalorder %s19, 0
    %p212 = por %p210, %p211
    %p213 = scmp.le.s32.totalorder 1, %s13
    %p214 = scmp.lt.s32.totalorder %s13, 5
    %p215 = pnand %p213, %p214
    %p216 = pneg %p215
    // Predicated region
    $region9: #{residual_block_forward.1} parent=5 // pred_check
      _
    $region10: #{residual_block_forward.1} parent=5 // pred_check_branch
      %218 = sbr.rel (%p215) target = $region12
    $region11: #{residual_block_forward.1} parent=5 // pred_region
      %s219 = ssub.s32 %s13, 1
      // Predicated region
      $region13: #{residual_block_forward.1} parent=11 // pred_check
        %p220 = pneg %p72
      $region14: #{residual_block_forward.1} parent=11 // pred_check_branch
        %222 = sbr.rel (%p220) target = $region16
      $region15: #{residual_block_forward.1} parent=11 // pred_region
        _
      $region16: #{residual_block_forward.1} parent=11 // pred_fallthru
        _
      // Predicated region
      $region17: #{residual_block_forward.1} parent=11 // pred_check
        %p223 = pneg %p93
      $region18: #{residual_block_forward.1} parent=11 // pred_check_branch
        %225 = sbr.rel (%p223) target = $region20
      $region19: #{residual_block_forward.1} parent=11 // pred_region
        _
      $region20: #{residual_block_forward.1} parent=11 // pred_fallthru
        _
      // Predicated region
      $region21: #{residual_block_forward.1} parent=11 // pred_check
        %p226 = pneg %p114
      $region22: #{residual_block_forward.1} parent=11 // pred_check_branch
        %228 = sbr.rel (%p226) target = $region24
      $region23: #{residual_block_forward.1} parent=11 // pred_region
        _
      $region24: #{residual_block_forward.1} parent=11 // pred_fallthru
        _
      // Predicated region
      $region25: #{residual_block_forward.1} parent=11 // pred_check
        %p229 = pneg %p135
      $region26: #{residual_block_forward.1} parent=11 // pred_check_branch
        %231 = sbr.rel (%p229) target = $region28
      $region27: #{residual_block_forward.1} parent=11 // pred_region
        _
      $region28: #{residual_block_forward.1} parent=11 // pred_fallthru
        _
      // Predicated region
      $region29: #{residual_block_forward.1} parent=11 // pred_check
        %p232 = pneg %p156
      $region30: #{residual_block_forward.1} parent=11 // pred_check_branch
        %234 = sbr.rel (%p232) target = $region32
      $region31: #{residual_block_forward.1} parent=11 // pred_region
        _
      $region32: #{residual_block_forward.1} parent=11 // pred_fallthru
        _
      // Predicated region
      $region33: #{residual_block_forward.1} parent=11 // pred_check
        %p235 = pneg %p177
      $region34: #{residual_block_forward.1} parent=11 // pred_check_branch
        %237 = sbr.rel (%p235) target = $region36
      $region35: #{residual_block_forward.1} parent=11 // pred_region
        _
      $region36: #{residual_block_forward.1} parent=11 // pred_fallthru
        _
    $region12: #{residual_block_forward.1} parent=5 // pred_fallthru
      _
    %p238 = scmp.lt.s32.totalorder %s13, 4
    // Predicated region
    $region37: #{residual_block_forward.1} parent=5 // pred_check
      %p239 = pneg %p238
    $region38: #{residual_block_forward.1} parent=5 // pred_check_branch
      %241 = sbr.rel (%p239) target = $region40
    $region39: #{residual_block_forward.1} parent=5 // pred_region
      // Predicated region
      $region41: #{residual_block_forward.1} parent=39 // pred_check
        %p242 = pneg %p45
      $region42: #{residual_block_forward.1} parent=39 // pred_check_branch
        %244 = sbr.rel (%p242) target = $region44
      $region43: #{residual_block_forward.1} parent=39 // pred_region
        %p245 = scmp.lt.s32.totalorder %s20, 1
        %s246 = scalar_select %p245, %s20, 1
        %s247 = smul.addr %s246, 8
        %s248 = smul.addr %s247, 8
        %s249 = scalar_lea.vmem %s0, %s248
      $region44: #{residual_block_forward.1} parent=39 // pred_fallthru
        _
    $region40: #{residual_block_forward.1} parent=5 // pred_fallthru
      _
    %p250 = scmp.le.s32.totalorder 1, %s13
    %p251 = scmp.lt.s32.totalorder %s13, 5
    %p252 = pnand %p250, %p251
    %p253 = pneg %p252
    // Predicated region
    $region45: #{residual_block_forward.1} parent=5 // pred_check
      _
    $region46: #{residual_block_forward.1} parent=5 // pred_check_branch
      %255 = sbr.rel (%p252) target = $region48
    $region47: #{residual_block_forward.1} parent=5 // pred_region
      %s256 = ssub.s32 %s13, 1
      %p257 = scmp.lt.s32.totalorder %s22, 1
      %s258 = scalar_select %p257, %s22, 1
      %s259 = smul.addr %s258, 8
      %s260 = smul.addr %s259, 8
      %s261 = scalar_lea.vmem %s0, %s260
      %p262 = pneg %p51
      %p263 = pneg %p48
      %p264 = pneg %p72
      %p265 = pneg %p69
      %p266 = pneg %p93
      %p267 = pneg %p90
      %p268 = pneg %p114
      %p269 = pneg %p111
      %p270 = pneg %p135
      %p271 = pneg %p132
      %p272 = pneg %p156
      %p273 = pneg %p153
      %p274 = pneg %p177
      %p275 = pneg %p174
      %p276 = pneg %p205
      %p277 = pneg %p202
      %s278 = smul.u32 4, %s23
      %p279 = scmp.lt.s32.totalorder %s22, 1
      %s280 = scalar_select %p279, %s22, 1
      %p281 = scmp.lt.s32.totalorder %s278, 7
      %s282 = scalar_select %p281, %s278, 7
      %s283 = smul.addr %s280, 8
      %s284 = sadd.s32 %s282, %s283
      %s285 = smul.addr %s284, 8
      %s286 = scalar_lea.vmem %s7, %s285
      %p287 = scmp.lt.s32.totalorder %s22, 1
      %s288 = scalar_select %p287, %s22, 1
      %s289 = smul.addr %s288, 8
      %s290 = smul.addr %s289, 8
      %s291 = scalar_lea.vmem %s0, %s290
      %s292 = smul.u32 4, %s23
      %p293 = scmp.lt.s32.totalorder %s22, 1
      %s294 = scalar_select %p293, %s22, 1
      %p295 = scmp.lt.s32.totalorder %s292, 7
      %s296 = scalar_select %p295, %s292, 7
      %s297 = smul.addr %s294, 8
      %s298 = sadd.s32 %s296, %s297
      %s299 = smul.addr %s298, 8
      %s300 = scalar_lea.vmem %s7, %s299
      %s301 = smul.u32 4, %s23
      %s303 = smul.u32 %s23, 4
      %vm304 = vcmask 1040384
      %vm305 = vsmask.f32 256
      %vm306 = vmand %vm304, %vm305
      %v307 = vld [vmem:[#allocation2] sm:$0x1]
      %v308 = vsel %vm306, 0, %v307
      %309 = vst [vmem:[#allocation2] sm:$0x1] %v308
      %v310 = vld [vmem:[#allocation2 + $0x8] sm:$0x1]
      %v311 = vsel %vm306, 0, %v310
      %312 = vst [vmem:[#allocation2 + $0x8] sm:$0x1] %v311
      %v313 = vld [vmem:[#allocation2 + $0x10] sm:$0x1]
      %v314 = vsel %vm306, 0, %v313
      %315 = vst [vmem:[#allocation2 + $0x10] sm:$0x1] %v314
      %v316 = vld [vmem:[#allocation2 + $0x18] sm:$0x1]
      %v317 = vsel %vm306, 0, %v316
      %318 = vst [vmem:[#allocation2 + $0x18] sm:$0x1] %v317
      %v319 = vld [vmem:[#allocation2 + $0x20] sm:$0x1]
      %v320 = vsel %vm306, 0, %v319
      %321 = vst [vmem:[#allocation2 + $0x20] sm:$0x1] %v320
      %v322 = vld [vmem:[#allocation2 + $0x28] sm:$0x1]
      %v323 = vsel %vm306, 0, %v322
      %324 = vst [vmem:[#allocation2 + $0x28] sm:$0x1] %v323
      %v325 = vld [vmem:[#allocation2 + $0x30] sm:$0x1]
      %v326 = vsel %vm306, 0, %v325
      %327 = vst [vmem:[#allocation2 + $0x30] sm:$0x1] %v326
      %s328 = smul.u32 %s303, 8
      %s329 = scalar_lea.vmem %s291, %s328
      %v330 = vld [vmem:[%s329] sm:$0xff]
      %v331 = vld [vmem:[%s329 + $0x8] sm:$0xff]
      %v332 = vld [vmem:[%s329 + $0x10] sm:$0xff]
      %v333 = vld [vmem:[%s329 + $0x18] sm:$0xff]
      %v334 = vpack.c.bf16 %v330, %v330
      %v335 = vpack.c.bf16 %v331, %v331
      %v336 = vpack.c.bf16 %v332, %v332
      %v337 = vpack.c.bf16 %v333, %v333
      %v342 = vunpack.c.l.b16 %v334
      %v343 = vunpack.c.l.b16 %v335
      %v344 = vunpack.c.l.b16 %v336
      %v345 = vunpack.c.l.b16 %v337
      %v346 = vpack.c.b16 %v342, %v342
      %v347 = vpack.c.b16 %v343, %v343
      %v348 = vpack.c.b16 %v344, %v344
      %v349 = vpack.c.b16 %v345, %v345
      %v351 = vshrl.u32 %v346, 16
      %v353 = vrot.slane %v351, 7
      %v354 = vshll.u32 %v346, 16
      %v356 = vor.u32 %v353, %v354
      %v357 = vrot.slane %v353, 4
      %v359 = vshrl.u32 %v347, 16
      %v361 = vrot.slane %v359, 7
      %v362 = vshll.u32 %v347, 16
      %v364 = vor.u32 %v361, %v362
      %v365 = vrot.slane %v361, 4
      %v367 = vshrl.u32 %v348, 16
      %v369 = vrot.slane %v367, 7
      %v370 = vshll.u32 %v348, 16
      %v372 = vor.u32 %v369, %v370
      %v373 = vrot.slane %v369, 4
      %v375 = vshrl.u32 %v349, 16
      %v377 = vrot.slane %v375, 7
      %v378 = vshll.u32 %v349, 16
      %v380 = vor.u32 %v377, %v378
      %v381 = vrot.slane %v377, 4
      %s390 = scalar_lea.vmem [#allocation2], 16
      %vm391 = vcmask 1043456
      %vm392 = vsmask.f32 7938
      %vm393 = vmand %vm391, %vm392
      %v394 = vld [vmem:[%s390] sm:$0xf]
      %v395 = vsel %vm393, %v356, %v394
      %396 = vst [vmem:[%s390] sm:$0xf] %v395
      %v397 = vld [vmem:[%s390 + $0x4] sm:$0x1]
      %v398 = vsel %vm306, %v357, %v397
      %399 = vst [vmem:[%s390 + $0x4] sm:$0x1] %v398
      %v400 = vld [vmem:[%s390 + $0x8] sm:$0xf]
      %v401 = vsel %vm393, %v364, %v400
      %402 = vst [vmem:[%s390 + $0x8] sm:$0xf] %v401
      %v403 = vld [vmem:[%s390 + $0xc] sm:$0x1]
      %v404 = vsel %vm306, %v365, %v403
      %405 = vst [vmem:[%s390 + $0xc] sm:$0x1] %v404
      %v406 = vld [vmem:[%s390 + $0x10] sm:$0xf]
      %v407 = vsel %vm393, %v372, %v406
      %408 = vst [vmem:[%s390 + $0x10] sm:$0xf] %v407
      %v409 = vld [vmem:[%s390 + $0x14] sm:$0x1]
      %v410 = vsel %vm306, %v373, %v409
      %411 = vst [vmem:[%s390 + $0x14] sm:$0x1] %v410
      %v412 = vld [vmem:[%s390 + $0x18] sm:$0xf]
      %v413 = vsel %vm393, %v380, %v412
      %414 = vst [vmem:[%s390 + $0x18] sm:$0xf] %v413
      %v415 = vld [vmem:[%s390 + $0x1c] sm:$0x1]
      %v416 = vsel %vm306, %v381, %v415
      %417 = vst [vmem:[%s390 + $0x1c] sm:$0x1] %v416
      %p418 = scmp.eq.s32.totalorder %s23, 0
      // Predicated region
      $region49: #{residual_block_forward.1} parent=47 // pred_check
        %p419 = pneg %p418
      $region50: #{residual_block_forward.1} parent=47 // pred_check_branch
        %421 = sbr.rel (%p419) target = $region52
      $region51: #{residual_block_forward.1} parent=47 // pred_region
        %422 = vst [vmem:[#allocation2] sm:$0xf] 0
        %v423 = vld [vmem:[#allocation2 + $0x4] sm:$0x1]
        %v424 = vsel %vm306, 0, %v423
        %425 = vst [vmem:[#allocation2 + $0x4] sm:$0x1] %v424
        %426 = vst [vmem:[#allocation2 + $0x8] sm:$0xf] 0
        %v427 = vld [vmem:[#allocation2 + $0xc] sm:$0x1]
        %v428 = vsel %vm306, 0, %v427
        %429 = vst [vmem:[#allocation2 + $0xc] sm:$0x1] %v428
      $region52: #{residual_block_forward.1} parent=47 // pred_fallthru
        _
      %p430 = scmp.gt.s32.totalorder %s23, 0
      // Predicated region
      $region53: #{residual_block_forward.1} parent=47 // pred_check
        %p431 = pneg %p430
      $region54: #{residual_block_forward.1} parent=47 // pred_check_branch
        %433 = sbr.rel (%p431) target = $region56
      $region55: #{residual_block_forward.1} parent=47 // pred_region
        %s434 = ssub.s32 %s303, 2
        %s435 = smul.u32 %s434, 8
        %s436 = scalar_lea.vmem %s291, %s435
        %v437 = vld [vmem:[%s436] sm:$0xff]
        %v438 = vld [vmem:[%s436 + $0x8] sm:$0xff]
        %v439 = vpack.c.bf16 %v437, %v437
        %v440 = vpack.c.bf16 %v438, %v438
        %v443 = vunpack.c.l.b16 %v439
        %v444 = vunpack.c.l.b16 %v440
        %v445 = vpack.c.b16 %v443, %v443
        %v446 = vpack.c.b16 %v444, %v444
        %v448 = vshrl.u32 %v445, 16
        %v450 = vrot.slane %v448, 7
        %v451 = vshll.u32 %v445, 16
        %v453 = vor.u32 %v450, %v451
        %v454 = vrot.slane %v450, 4
        %v456 = vshrl.u32 %v446, 16
        %v458 = vrot.slane %v456, 7
        %v459 = vshll.u32 %v446, 16
        %v461 = vor.u32 %v458, %v459
        %v462 = vrot.slane %v458, 4
        %v467 = vld [vmem:[#allocation2] sm:$0xf]
        %v468 = vsel %vm393, %v453, %v467
        %469 = vst [vmem:[#allocation2] sm:$0xf] %v468
        %v470 = vld [vmem:[#allocation2 + $0x4] sm:$0x1]
        %v471 = vsel %vm306, %v454, %v470
        %472 = vst [vmem:[#allocation2 + $0x4] sm:$0x1] %v471
        %v473 = vld [vmem:[#allocation2 + $0x8] sm:$0xf]
        %v474 = vsel %vm393, %v461, %v473
        %475 = vst [vmem:[#allocation2 + $0x8] sm:$0xf] %v474
        %v476 = vld [vmem:[#allocation2 + $0xc] sm:$0x1]
        %v477 = vsel %vm306, %v462, %v476
        %478 = vst [vmem:[#allocation2 + $0xc] sm:$0x1] %v477
      $region56: #{residual_block_forward.1} parent=47 // pred_fallthru
        _
      %p479 = scmp.eq.s32.totalorder %s23, 1
      // Predicated region
      $region57: #{residual_block_forward.1} parent=47 // pred_check
        %p480 = pneg %p479
      $region58: #{residual_block_forward.1} parent=47 // pred_check_branch
        %482 = sbr.rel (%p480) target = $region60
      $region59: #{residual_block_forward.1} parent=47 // pred_region
        %s483 = scalar_lea.vmem [#allocation2], 48
        %484 = vst [vmem:[%s483] sm:$0xf] 0
        %v485 = vld [vmem:[%s483 + $0x4] sm:$0x1]
        %v486 = vsel %vm306, 0, %v485
        %487 = vst [vmem:[%s483 + $0x4] sm:$0x1] %v486
      $region60: #{residual_block_forward.1} parent=47 // pred_fallthru
        _
      %p488 = scmp.lt.s32.totalorder %s23, 1
      // Predicated region
      $region61: #{residual_block_forward.1} parent=47 // pred_check
        %p489 = pneg %p488
      $region62: #{residual_block_forward.1} parent=47 // pred_check_branch
        %491 = sbr.rel (%p489) target = $region64
      $region63: #{residual_block_forward.1} parent=47 // pred_region
        %s492 = sadd.s32 %s303, 4
        %s493 = smul.u32 %s492, 8
        %s494 = scalar_lea.vmem %s291, %s493
        %v495 = vld [vmem:[%s494] sm:$0xff]
        %v496 = vpack.c.bf16 %v495, %v495
        %v498 = vunpack.c.l.b16 %v496
        %v499 = vpack.c.b16 %v498, %v498
        %v501 = vshrl.u32 %v499, 16
        %v503 = vrot.slane %v501, 7
        %v504 = vshll.u32 %v499, 16
        %v506 = vor.u32 %v503, %v504
        %v507 = vrot.slane %v503, 4
        %s510 = scalar_lea.vmem [#allocation2], 48
        %v511 = vld [vmem:[%s510] sm:$0xf]
        %v512 = vsel %vm393, %v506, %v511
        %513 = vst [vmem:[%s510] sm:$0xf] %v512
        %v514 = vld [vmem:[%s510 + $0x4] sm:$0x1]
        %v515 = vsel %vm306, %v507, %v514
        %516 = vst [vmem:[%s510 + $0x4] sm:$0x1] %v515
      $region64: #{residual_block_forward.1} parent=47 // pred_fallthru
        _
      %v517 = vld [vmem:[#allocation2] sm:$0xf]
      %v518 = vld [vmem:[#allocation2 + $0x8] sm:$0xf]
      %v519 = vld [vmem:[#allocation2 + $0x10] sm:$0xf]
      %v520 = vld [vmem:[#allocation2 + $0x18] sm:$0xf]
      %v521 = vld [vmem:[#allocation2 + $0x20] sm:$0xf]
      %v522 = vld [vmem:[#allocation2 + $0x28] sm:$0xf]
      %v523 = vld [vmem:[#allocation2 + $0x4] sm:$0x1]
      %v524 = vld [vmem:[#allocation2 + $0xc] sm:$0x1]
      %v525 = vld [vmem:[#allocation2 + $0x14] sm:$0x1]
      %v526 = vld [vmem:[#allocation2 + $0x1c] sm:$0x1]
      %v527 = vld [vmem:[#allocation2 + $0x24] sm:$0x1]
      %v528 = vld [vmem:[#allocation2 + $0x2c] sm:$0x1]
      %v541 = vunpack.c.l.b16 %v517
      %v542 = vunpack.c.l.b16 %v523
      %v543 = vunpack.c.l.b16 %v518
      %v544 = vunpack.c.l.b16 %v524
      %v545 = vunpack.c.l.b16 %v519
      %v546 = vunpack.c.l.b16 %v525
      %v547 = vunpack.c.l.b16 %v520
      %v548 = vunpack.c.l.b16 %v526
      %v549 = vunpack.c.l.b16 %v521
      %v550 = vunpack.c.l.b16 %v527
      %v551 = vunpack.c.l.b16 %v522
      %v552 = vunpack.c.l.b16 %v528
      %v553 = vpack.c.b16 %v542, %v541
      %v554 = vpack.c.b16 %v544, %v543
      %v555 = vpack.c.b16 %v546, %v545
      %v556 = vpack.c.b16 %v548, %v547
      %v557 = vpack.c.b16 %v550, %v549
      %v558 = vpack.c.b16 %v552, %v551
      %v560 = vshrl.u32 %v553, 16
      %v562 = vshll.u32 %v553, 16
      %v564 = vrot.slane %v562, 1
      %v565 = vor.u32 %v560, %v564
      %v567 = vshrl.u32 %v554, 16
      %v569 = vshll.u32 %v554, 16
      %v571 = vrot.slane %v569, 1
      %v572 = vor.u32 %v567, %v571
      %v574 = vshrl.u32 %v555, 16
      %v576 = vshll.u32 %v555, 16
      %v578 = vrot.slane %v576, 1
      %v579 = vor.u32 %v574, %v578
      %v581 = vshrl.u32 %v556, 16
      %v583 = vshll.u32 %v556, 16
      %v585 = vrot.slane %v583, 1
      %v586 = vor.u32 %v581, %v585
      %v588 = vshrl.u32 %v557, 16
      %v590 = vshll.u32 %v557, 16
      %v592 = vrot.slane %v590, 1
      %v593 = vor.u32 %v588, %v592
      %v595 = vshrl.u32 %v558, 16
      %v597 = vshll.u32 %v558, 16
      %v599 = vrot.slane %v597, 1
      %v600 = vor.u32 %v595, %v599
      %v601 = vunpack.c.l.b16 %v565
      %v602 = vunpack.c.l.b16 %v572
      %v603 = vunpack.c.l.b16 %v579
      %v604 = vunpack.c.l.b16 %v586
      %v605 = vunpack.c.l.b16 %v593
      %v606 = vunpack.c.l.b16 %v600
      %v607 = vld [vmem:[%s1] sm:$0xf]
      %v608 = vld [vmem:[%s1 + $0x4] sm:$0xf]
      %v609 = vld [vmem:[%s1 + $0x8] sm:$0xf]
      %v610 = vld [vmem:[%s1 + $0xc] sm:$0xf]
      %v611 = vld [vmem:[%s1 + $0x10] sm:$0xf]
      %v612 = vld [vmem:[%s1 + $0x14] sm:$0xf]
      %v613 = vld [vmem:[%s1 + $0x18] sm:$0xf]
      %v614 = vld [vmem:[%s1 + $0x1c] sm:$0xf]
      %v615 = vld [vmem:[%s1 + $0x20] sm:$0xf]
      %v616 = vld [vmem:[%s1 + $0x24] sm:$0xf]
      %v617 = vld [vmem:[%s1 + $0x28] sm:$0xf]
      %v618 = vld [vmem:[%s1 + $0x2c] sm:$0xf]
      %v619 = vld [vmem:[%s1 + $0x30] sm:$0xf]
      %v620 = vld [vmem:[%s1 + $0x34] sm:$0xf]
      %v621 = vld [vmem:[%s1 + $0x38] sm:$0xf]
      %v622 = vld [vmem:[%s1 + $0x3c] sm:$0xf]
      %v623 = vld [vmem:[%s1 + $0x40] sm:$0xf]
      %v624 = vld [vmem:[%s1 + $0x44] sm:$0xf]
      %v625 = vld [vmem:[%s1 + $0x48] sm:$0xf]
      %v626 = vld [vmem:[%s1 + $0x4c] sm:$0xf]
      %v627 = vld [vmem:[%s1 + $0x50] sm:$0xf]
      %v628 = vld [vmem:[%s1 + $0x54] sm:$0xf]
      %v629 = vld [vmem:[%s1 + $0x58] sm:$0xf]
      %v630 = vld [vmem:[%s1 + $0x5c] sm:$0xf]
      %v631 = vld [vmem:[%s1 + $0x60] sm:$0xf]
      %v632 = vld [vmem:[%s1 + $0x64] sm:$0xf]
      %v633 = vld [vmem:[%s1 + $0x68] sm:$0xf]
      %v634 = vld [vmem:[%s1 + $0x6c] sm:$0xf]
      %v635 = vld [vmem:[%s1 + $0x70] sm:$0xf]
      %v636 = vld [vmem:[%s1 + $0x74] sm:$0xf]
      %v637 = vld [vmem:[%s1 + $0x78] sm:$0xf]
      %v638 = vld [vmem:[%s1 + $0x7c] sm:$0xf]
      %s639 = scalar_lea.vmem [#allocation2], 8
      %v640 = vld [vmem:[%s639] sm:$0xf]
      %v641 = vld [vmem:[%s639 + $0x8] sm:$0xf]
      %v642 = vld [vmem:[%s639 + $0x10] sm:$0xf]
      %v643 = vld [vmem:[%s639 + $0x18] sm:$0xf]
      %v644 = vld [vmem:[%s639 + $0x20] sm:$0xf]
      %v645 = vld [vmem:[%s639 + $0x28] sm:$0xf]
      %v646 = vld [vmem:[%s639 + $0x4] sm:$0x1]
      %v647 = vld [vmem:[%s639 + $0xc] sm:$0x1]
      %v648 = vld [vmem:[%s639 + $0x14] sm:$0x1]
      %v649 = vld [vmem:[%s639 + $0x1c] sm:$0x1]
      %v650 = vld [vmem:[%s639 + $0x24] sm:$0x1]
      %v651 = vld [vmem:[%s639 + $0x2c] sm:$0x1]
      %v664 = vunpack.c.l.b16 %v640
      %v665 = vunpack.c.l.b16 %v646
      %v666 = vunpack.c.l.b16 %v641
      %v667 = vunpack.c.l.b16 %v647
      %v668 = vunpack.c.l.b16 %v642
      %v669 = vunpack.c.l.b16 %v648
      %v670 = vunpack.c.l.b16 %v643
      %v671 = vunpack.c.l.b16 %v649
      %v672 = vunpack.c.l.b16 %v644
      %v673 = vunpack.c.l.b16 %v650
      %v674 = vunpack.c.l.b16 %v645
      %v675 = vunpack.c.l.b16 %v651
      %v676 = vpack.c.b16 %v665, %v664
      %v677 = vpack.c.b16 %v667, %v666
      %v678 = vpack.c.b16 %v669, %v668
      %v679 = vpack.c.b16 %v671, %v670
      %v680 = vpack.c.b16 %v673, %v672
      %v681 = vpack.c.b16 %v675, %v674
      %v683 = vshrl.u32 %v676, 16
      %v685 = vshll.u32 %v676, 16
      %v687 = vrot.slane %v685, 1
      %v688 = vor.u32 %v683, %v687
      %v690 = vshrl.u32 %v677, 16
      %v692 = vshll.u32 %v677, 16
      %v694 = vrot.slane %v692, 1
      %v695 = vor.u32 %v690, %v694
      %v697 = vshrl.u32 %v678, 16
      %v699 = vshll.u32 %v678, 16
      %v701 = vrot.slane %v699, 1
      %v702 = vor.u32 %v697, %v701
      %v704 = vshrl.u32 %v679, 16
      %v706 = vshll.u32 %v679, 16
      %v708 = vrot.slane %v706, 1
      %v709 = vor.u32 %v704, %v708
      %v711 = vshrl.u32 %v680, 16
      %v713 = vshll.u32 %v680, 16
      %v715 = vrot.slane %v713, 1
      %v716 = vor.u32 %v711, %v715
      %v718 = vshrl.u32 %v681, 16
      %v720 = vshll.u32 %v681, 16
      %v722 = vrot.slane %v720, 1
      %v723 = vor.u32 %v718, %v722
      %v724 = vunpack.c.l.b16 %v688
      %v725 = vunpack.c.l.b16 %v695
      %v726 = vunpack.c.l.b16 %v702
      %v727 = vunpack.c.l.b16 %v709
      %v728 = vunpack.c.l.b16 %v716
      %v729 = vunpack.c.l.b16 %v723
      %s730 = scalar_lea.vmem %s1, 128
      %v731 = vld [vmem:[%s730] sm:$0xf]
      %v732 = vld [vmem:[%s730 + $0x4] sm:$0xf]
      %v733 = vld [vmem:[%s730 + $0x8] sm:$0xf]
      %v734 = vld [vmem:[%s730 + $0xc] sm:$0xf]
      %v735 = vld [vmem:[%s730 + $0x10] sm:$0xf]
      %v736 = vld [vmem:[%s730 + $0x14] sm:$0xf]
      %v737 = vld [vmem:[%s730 + $0x18] sm:$0xf]
      %v738 = vld [vmem:[%s730 + $0x1c] sm:$0xf]
      %v739 = vld [vmem:[%s730 + $0x20] sm:$0xf]
      %v740 = vld [vmem:[%s730 + $0x24] sm:$0xf]
      %v741 = vld [vmem:[%s730 + $0x28] sm:$0xf]
      %v742 = vld [vmem:[%s730 + $0x2c] sm:$0xf]
      %v743 = vld [vmem:[%s730 + $0x30] sm:$0xf]
      %v744 = vld [vmem:[%s730 + $0x34] sm:$0xf]
      %v745 = vld [vmem:[%s730 + $0x38] sm:$0xf]
      %v746 = vld [vmem:[%s730 + $0x3c] sm:$0xf]
      %v747 = vld [vmem:[%s730 + $0x40] sm:$0xf]
      %v748 = vld [vmem:[%s730 + $0x44] sm:$0xf]
      %v749 = vld [vmem:[%s730 + $0x48] sm:$0xf]
      %v750 = vld [vmem:[%s730 + $0x4c] sm:$0xf]
      %v751 = vld [vmem:[%s730 + $0x50] sm:$0xf]
      %v752 = vld [vmem:[%s730 + $0x54] sm:$0xf]
      %v753 = vld [vmem:[%s730 + $0x58] sm:$0xf]
      %v754 = vld [vmem:[%s730 + $0x5c] sm:$0xf]
      %v755 = vld [vmem:[%s730 + $0x60] sm:$0xf]
      %v756 = vld [vmem:[%s730 + $0x64] sm:$0xf]
      %v757 = vld [vmem:[%s730 + $0x68] sm:$0xf]
      %v758 = vld [vmem:[%s730 + $0x6c] sm:$0xf]
      %v759 = vld [vmem:[%s730 + $0x70] sm:$0xf]
      %v760 = vld [vmem:[%s730 + $0x74] sm:$0xf]
      %v761 = vld [vmem:[%s730 + $0x78] sm:$0xf]
      %v762 = vld [vmem:[%s730 + $0x7c] sm:$0xf]
      %v763 = vpack.c.b16 %v666, %v664
      %v764 = vpack.c.b16 %v725, %v724
      %v765 = vpack.c.b16 %v670, %v668
      %v766 = vpack.c.b16 %v727, %v726
      %v767 = vpack.c.b16 %v674, %v672
      %v768 = vpack.c.b16 %v729, %v728
      %v807 = vunpack.c.l.b16 %v731
      %v808 = vunpack.c.l.b16 %v732
      %v809 = vunpack.c.l.b16 %v733
      %v810 = vunpack.c.l.b16 %v734
      %v811 = vunpack.c.l.b16 %v735
      %v812 = vunpack.c.l.b16 %v736
      %v813 = vunpack.c.l.b16 %v737
      %v814 = vunpack.c.l.b16 %v738
      %v815 = vunpack.c.l.b16 %v739
      %v816 = vunpack.c.l.b16 %v740
      %v817 = vunpack.c.l.b16 %v741
      %v818 = vunpack.c.l.b16 %v742
      %v819 = vunpack.c.l.b16 %v743
      %v820 = vunpack.c.l.b16 %v744
      %v821 = vunpack.c.l.b16 %v745
      %v822 = vunpack.c.l.b16 %v746
      %v823 = vunpack.c.l.b16 %v747
      %v824 = vunpack.c.l.b16 %v748
      %v825 = vunpack.c.l.b16 %v749
      %v826 = vunpack.c.l.b16 %v750
      %v827 = vunpack.c.l.b16 %v751
      %v828 = vunpack.c.l.b16 %v752
      %v829 = vunpack.c.l.b16 %v753
      %v830 = vunpack.c.l.b16 %v754
      %v831 = vunpack.c.l.b16 %v755
      %v832 = vunpack.c.l.b16 %v756
      %v833 = vunpack.c.l.b16 %v757
      %v834 = vunpack.c.l.b16 %v758
      %v835 = vunpack.c.l.b16 %v759
      %v836 = vunpack.c.l.b16 %v760
      %v837 = vunpack.c.l.b16 %v761
      %v838 = vunpack.c.l.b16 %v762
      %v839 = vpack.c.b16 %v808, %v807
      %v840 = vpack.c.b16 %v810, %v809
      %v841 = vpack.c.b16 %v812, %v811
      %v842 = vpack.c.b16 %v814, %v813
      %v843 = vpack.c.b16 %v816, %v815
      %v844 = vpack.c.b16 %v818, %v817
      %v845 = vpack.c.b16 %v820, %v819
      %v846 = vpack.c.b16 %v822, %v821
      %v847 = vpack.c.b16 %v824, %v823
      %v848 = vpack.c.b16 %v826, %v825
      %v849 = vpack.c.b16 %v828, %v827
      %v850 = vpack.c.b16 %v830, %v829
      %v851 = vpack.c.b16 %v832, %v831
      %v852 = vpack.c.b16 %v834, %v833
      %v853 = vpack.c.b16 %v836, %v835
      %v854 = vpack.c.b16 %v838, %v837
      %871 = vmatprep.subr.bf16.mxu0 0
      %872 = vmatpush1.bf16.msra.mxu0 %v846
      %873 = vmatprep.subr.bf16.mxu0 0
      %874 = vmatpush1.bf16.msra.mxu0 %v845
      %875 = vmatprep.subr.bf16.mxu0 0
      %876 = vmatpush1.bf16.msra.mxu0 %v844
      %877 = vmatprep.subr.bf16.mxu0 0
      %878 = vmatpush1.bf16.msra.mxu0 %v843
      %879 = vmatprep.subr.bf16.mxu0 0
      %880 = vmatpush1.bf16.msra.mxu0 %v842
      %881 = vmatprep.subr.bf16.mxu0 0
      %882 = vmatpush1.bf16.msra.mxu0 %v841
      %883 = vmatprep.subr.bf16.mxu0 0
      %884 = vmatpush1.bf16.msra.mxu0 %v840
      %885 = vmatprep.subr.bf16.mxu0 0
      %886 = vmatpush1.bf16.msra.mxu0 %v839
      %887 = vmatprep.subr.bf16.mxu0 0
      %888 = vmatpush2.bf16.msra.mxu0 %v854
      %889 = vmatprep.subr.bf16.mxu0 0
      %890 = vmatpush2.bf16.msra.mxu0 %v853
      %891 = vmatprep.subr.bf16.mxu0 0
      %892 = vmatpush2.bf16.msra.mxu0 %v852
      %893 = vmatprep.subr.bf16.mxu0 0
      %894 = vmatpush2.bf16.msra.mxu0 %v851
      %895 = vmatprep.subr.bf16.mxu0 0
      %896 = vmatpush2.bf16.msra.mxu0 %v850
      %897 = vmatprep.subr.bf16.mxu0 0
      %898 = vmatpush2.bf16.msra.mxu0 %v849
      %899 = vmatprep.subr.bf16.mxu0 0
      %900 = vmatpush2.bf16.msra.mxu0 %v848
      %901 = vmatprep.subr.bf16.mxu0 0
      %902 = vmatpush2.bf16.msra.mxu0 %v847
      %903 = vmatprep.mubr.bf16.mxu0 %v764
      %904 = vmatmul.mubr.bf16.gmra.mxu0 %v763
      %v905 = vpop.f32.mrf.mxu0
      %v906 = vadd.f32 0.0, %v905
      %v907 = vpop.f32.mrf.mxu0
      %v908 = vpop.f32.mrf.mxu0
      %v909 = vadd.f32 0.0, %v908
      %v910 = vpop.f32.mrf.mxu0
      %911 = vmatprep.mubr.bf16.mxu0 %v766
      %912 = vmatmul.mubr.bf16.gmra.mxu0 %v765
      %v913 = vpop.f32.mrf.mxu0
      %v914 = vadd.f32 0.0, %v913
      %v915 = vpop.f32.mrf.mxu0
      %v916 = vpop.f32.mrf.mxu0
      %v917 = vadd.f32 0.0, %v916
      %v918 = vpop.f32.mrf.mxu0
      %919 = vmatprep.mubr.bf16.mxu0 %v768
      %920 = vmatmul.mubr.bf16.gmra.mxu0 %v767
      %v921 = vpop.f32.mrf.mxu0
      %v922 = vadd.f32 0.0, %v921
      %v923 = vpop.f32.mrf.mxu0
      %v924 = vpop.f32.mrf.mxu0
      %v925 = vadd.f32 0.0, %v924
      %v926 = vpop.f32.mrf.mxu0
      %927 = vdwg.mxu0
      %v928 = vpack.c.b16 %v543, %v541
      %v929 = vpack.c.b16 %v602, %v601
      %v930 = vpack.c.b16 %v547, %v545
      %v931 = vpack.c.b16 %v604, %v603
      %v932 = vpack.c.b16 %v551, %v549
      %v933 = vpack.c.b16 %v606, %v605
      %v972 = vunpack.c.l.b16 %v607
      %v973 = vunpack.c.l.b16 %v608
      %v974 = vunpack.c.l.b16 %v609
      %v975 = vunpack.c.l.b16 %v610
      %v976 = vunpack.c.l.b16 %v611
      %v977 = vunpack.c.l.b16 %v612
      %v978 = vunpack.c.l.b16 %v613
      %v979 = vunpack.c.l.b16 %v614
      %v980 = vunpack.c.l.b16 %v615
      %v981 = vunpack.c.l.b16 %v616
      %v982 = vunpack.c.l.b16 %v617
      %v983 = vunpack.c.l.b16 %v618
      %v984 = vunpack.c.l.b16 %v619
      %v985 = vunpack.c.l.b16 %v620
      %v986 = vunpack.c.l.b16 %v621
      %v987 = vunpack.c.l.b16 %v622
      %v988 = vunpack.c.l.b16 %v623
      %v989 = vunpack.c.l.b16 %v624
      %v990 = vunpack.c.l.b16 %v625
      %v991 = vunpack.c.l.b16 %v626
      %v992 = vunpack.c.l.b16 %v627
      %v993 = vunpack.c.l.b16 %v628
      %v994 = vunpack.c.l.b16 %v629
      %v995 = vunpack.c.l.b16 %v630
      %v996 = vunpack.c.l.b16 %v631
      %v997 = vunpack.c.l.b16 %v632
      %v998 = vunpack.c.l.b16 %v633
      %v999 = vunpack.c.l.b16 %v634
      %v1000 = vunpack.c.l.b16 %v635
      %v1001 = vunpack.c.l.b16 %v636
      %v1002 = vunpack.c.l.b16 %v637
      %v1003 = vunpack.c.l.b16 %v638
      %v1004 = vpack.c.b16 %v973, %v972
      %v1005 = vpack.c.b16 %v975, %v974
      %v1006 = vpack.c.b16 %v977, %v976
      %v1007 = vpack.c.b16 %v979, %v978
      %v1008 = vpack.c.b16 %v981, %v980
      %v1009 = vpack.c.b16 %v983, %v982
      %v1010 = vpack.c.b16 %v985, %v984
      %v1011 = vpack.c.b16 %v987, %v986
      %v1012 = vpack.c.b16 %v989, %v988
      %v1013 = vpack.c.b16 %v991, %v990
      %v1014 = vpack.c.b16 %v993, %v992
      %v1015 = vpack.c.b16 %v995, %v994
      %v1016 = vpack.c.b16 %v997, %v996
      %v1017 = vpack.c.b16 %v999, %v998
      %v1018 = vpack.c.b16 %v1001, %v1000
      %v1019 = vpack.c.b16 %v1003, %v1002
      %1036 = vmatprep.subr.bf16.mxu0 0
      %1037 = vmatpush1.bf16.msra.mxu0 %v1011
      %1038 = vmatprep.subr.bf16.mxu0 0
      %1039 = vmatpush1.bf16.msra.mxu0 %v1010
      %1040 = vmatprep.subr.bf16.mxu0 0
      %1041 = vmatpush1.bf16.msra.mxu0 %v1009
      %1042 = vmatprep.subr.bf16.mxu0 0
      %1043 = vmatpush1.bf16.msra.mxu0 %v1008
      %1044 = vmatprep.subr.bf16.mxu0 0
      %1045 = vmatpush1.bf16.msra.mxu0 %v1007
      %1046 = vmatprep.subr.bf16.mxu0 0
      %1047 = vmatpush1.bf16.msra.mxu0 %v1006
      %1048 = vmatprep.subr.bf16.mxu0 0
      %1049 = vmatpush1.bf16.msra.mxu0 %v1005
      %1050 = vmatprep.subr.bf16.mxu0 0
      %1051 = vmatpush1.bf16.msra.mxu0 %v1004
      %1052 = vmatprep.subr.bf16.mxu0 0
      %1053 = vmatpush2.bf16.msra.mxu0 %v1019
      %1054 = vmatprep.subr.bf16.mxu0 0
      %1055 = vmatpush2.bf16.msra.mxu0 %v1018
      %1056 = vmatprep.subr.bf16.mxu0 0
      %1057 = vmatpush2.bf16.msra.mxu0 %v1017
      %1058 = vmatprep.subr.bf16.mxu0 0
      %1059 = vmatpush2.bf16.msra.mxu0 %v1016
      %1060 = vmatprep.subr.bf16.mxu0 0
      %1061 = vmatpush2.bf16.msra.mxu0 %v1015
      %1062 = vmatprep.subr.bf16.mxu0 0
      %1063 = vmatpush2.bf16.msra.mxu0 %v1014
      %1064 = vmatprep.subr.bf16.mxu0 0
      %1065 = vmatpush2.bf16.msra.mxu0 %v1013
      %1066 = vmatprep.subr.bf16.mxu0 0
      %1067 = vmatpush2.bf16.msra.mxu0 %v1012
      %1068 = vmatprep.mubr.bf16.mxu0 %v929
      %1069 = vmatmul.mubr.bf16.gmra.mxu0 %v928
      %v1070 = vpop.f32.mrf.mxu0
      %v1071 = vadd.f32 %v906, %v1070
      %v1072 = vpop.f32.mrf.mxu0
      %v1073 = vpop.f32.mrf.mxu0
      %v1074 = vadd.f32 %v909, %v1073
      %v1075 = vpop.f32.mrf.mxu0
      %1076 = vmatprep.mubr.bf16.mxu0 %v931
      %1077 = vmatmul.mubr.bf16.gmra.mxu0 %v930
      %v1078 = vpop.f32.mrf.mxu0
      %v1079 = vadd.f32 %v914, %v1078
      %v1080 = vpop.f32.mrf.mxu0
      %v1081 = vpop.f32.mrf.mxu0
      %v1082 = vadd.f32 %v917, %v1081
      %v1083 = vpop.f32.mrf.mxu0
      %1084 = vmatprep.mubr.bf16.mxu0 %v933
      %1085 = vmatmul.mubr.bf16.gmra.mxu0 %v932
      %v1086 = vpop.f32.mrf.mxu0
      %v1087 = vadd.f32 %v922, %v1086
      %v1088 = vpop.f32.mrf.mxu0
      %v1089 = vpop.f32.mrf.mxu0
      %v1090 = vadd.f32 %v925, %v1089
      %v1091 = vpop.f32.mrf.mxu0
      %1092 = vdwg.mxu0
      %v1093 = vld [vmem:[%s2] sm:$0x1]
      %v1095 = vlaneseq
      %v1096 = vshrl.u32 %v1095, 7
      %v1097 = vsub.s32 0, %v1096
      %v1098 = vrot.slane %v1093, %v1097
      %v1100 = vadd.f32 %v1071, %v1098
      %v1101 = vadd.f32 %v1074, %v1098
      %v1102 = vadd.f32 %v1079, %v1098
      %v1103 = vadd.f32 %v1082, %v1098
      %v1104 = vadd.f32 %v1087, %v1098
      %v1105 = vadd.f32 %v1090, %v1098
      %v1106 = vmax.f32 %v1100, 0.0
      %v1107 = vmax.f32 %v1101, 0.0
      %v1108 = vmax.f32 %v1102, 0.0
      %v1109 = vmax.f32 %v1103, 0.0
      %v1110 = vmax.f32 %v1104, 0.0
      %v1111 = vmax.f32 %v1105, 0.0
      %v1112 = vpack.c.bf16 %v1107, %v1106
      %v1113 = vpack.c.bf16 %v1109, %v1108
      %v1114 = vpack.c.bf16 %v1111, %v1110
      %v1115 = vld [vmem:[#allocation3] sm:$0x1]
      %v1116 = vsel %vm306, 0, %v1115
      %1117 = vst [vmem:[#allocation3] sm:$0x1] %v1116
      %v1118 = vld [vmem:[#allocation3 + $0x8] sm:$0x1]
      %v1119 = vsel %vm306, 0, %v1118
      %1120 = vst [vmem:[#allocation3 + $0x8] sm:$0x1] %v1119
      %v1121 = vld [vmem:[#allocation3 + $0x10] sm:$0x1]
      %v1122 = vsel %vm306, 0, %v1121
      %1123 = vst [vmem:[#allocation3 + $0x10] sm:$0x1] %v1122
      %v1124 = vld [vmem:[#allocation3 + $0x18] sm:$0x1]
      %v1125 = vsel %vm306, 0, %v1124
      %1126 = vst [vmem:[#allocation3 + $0x18] sm:$0x1] %v1125
      %v1127 = vld [vmem:[#allocation3 + $0x20] sm:$0x1]
      %v1128 = vsel %vm306, 0, %v1127
      %1129 = vst [vmem:[#allocation3 + $0x20] sm:$0x1] %v1128
      %v1130 = vld [vmem:[#allocation3 + $0x28] sm:$0x1]
      %v1131 = vsel %vm306, 0, %v1130
      %1132 = vst [vmem:[#allocation3 + $0x28] sm:$0x1] %v1131
      %vm1133 = vmand %vm304, %vm392
      %v1134 = vld [vmem:[#allocation3 + $0x4] sm:$0x1]
      %v1135 = vsel %vm1133, 0, %v1134
      %1136 = vst [vmem:[#allocation3 + $0x4] sm:$0x1] %v1135
      %v1137 = vld [vmem:[#allocation3 + $0xc] sm:$0x1]
      %v1138 = vsel %vm1133, 0, %v1137
      %1139 = vst [vmem:[#allocation3 + $0xc] sm:$0x1] %v1138
      %v1140 = vld [vmem:[#allocation3 + $0x14] sm:$0x1]
      %v1141 = vsel %vm1133, 0, %v1140
      %1142 = vst [vmem:[#allocation3 + $0x14] sm:$0x1] %v1141
      %v1143 = vld [vmem:[#allocation3 + $0x1c] sm:$0x1]
      %v1144 = vsel %vm1133, 0, %v1143
      %1145 = vst [vmem:[#allocation3 + $0x1c] sm:$0x1] %v1144
      %v1146 = vld [vmem:[#allocation3 + $0x24] sm:$0x1]
      %v1147 = vsel %vm1133, 0, %v1146
      %1148 = vst [vmem:[#allocation3 + $0x24] sm:$0x1] %v1147
      %v1149 = vld [vmem:[#allocation3 + $0x2c] sm:$0x1]
      %v1150 = vsel %vm1133, 0, %v1149
      %1151 = vst [vmem:[#allocation3 + $0x2c] sm:$0x1] %v1150
      %v1155 = vunpack.c.l.b16 %v1112
      %v1156 = vunpack.c.h.b16 %v1112
      %v1157 = vunpack.c.l.b16 %v1113
      %v1158 = vunpack.c.h.b16 %v1113
      %v1159 = vunpack.c.l.b16 %v1114
      %v1160 = vunpack.c.h.b16 %v1114
      %v1161 = vpack.c.b16 %v1155, %v1155
      %v1162 = vpack.c.b16 %v1156, %v1156
      %v1163 = vpack.c.b16 %v1157, %v1157
      %v1164 = vpack.c.b16 %v1158, %v1158
      %v1165 = vpack.c.b16 %v1159, %v1159
      %v1166 = vpack.c.b16 %v1160, %v1160
      %v1168 = vshrl.u32 %v1161, 16
      %v1170 = vrot.slane %v1168, 7
      %v1171 = vshll.u32 %v1161, 16
      %v1173 = vor.u32 %v1170, %v1171
      %v1174 = vrot.slane %v1170, 4
      %v1176 = vshrl.u32 %v1162, 16
      %v1178 = vrot.slane %v1176, 7
      %v1179 = vshll.u32 %v1162, 16
      %v1181 = vor.u32 %v1178, %v1179
      %v1182 = vrot.slane %v1178, 4
      %v1184 = vshrl.u32 %v1163, 16
      %v1186 = vrot.slane %v1184, 7
      %v1187 = vshll.u32 %v1163, 16
      %v1189 = vor.u32 %v1186, %v1187
      %v1190 = vrot.slane %v1186, 4
      %v1192 = vshrl.u32 %v1164, 16
      %v1194 = vrot.slane %v1192, 7
      %v1195 = vshll.u32 %v1164, 16
      %v1197 = vor.u32 %v1194, %v1195
      %v1198 = vrot.slane %v1194, 4
      %v1200 = vshrl.u32 %v1165, 16
      %v1202 = vrot.slane %v1200, 7
      %v1203 = vshll.u32 %v1165, 16
      %v1205 = vor.u32 %v1202, %v1203
      %v1206 = vrot.slane %v1202, 4
      %v1208 = vshrl.u32 %v1166, 16
      %v1210 = vrot.slane %v1208, 7
      %v1211 = vshll.u32 %v1166, 16
      %v1213 = vor.u32 %v1210, %v1211
      %v1214 = vrot.slane %v1210, 4
      %v1227 = vld [vmem:[#allocation3] sm:$0xf]
      %v1228 = vsel %vm393, %v1173, %v1227
      %1229 = vst [vmem:[#allocation3] sm:$0xf] %v1228
      %v1230 = vld [vmem:[#allocation3 + $0x4] sm:$0x1]
      %v1231 = vsel %vm306, %v1174, %v1230
      %1232 = vst [vmem:[#allocation3 + $0x4] sm:$0x1] %v1231
      %v1233 = vld [vmem:[#allocation3 + $0x8] sm:$0xf]
      %v1234 = vsel %vm393, %v1181, %v1233
      %1235 = vst [vmem:[#allocation3 + $0x8] sm:$0xf] %v1234
      %v1236 = vld [vmem:[#allocation3 + $0xc] sm:$0x1]
      %v1237 = vsel %vm306, %v1182, %v1236
      %1238 = vst [vmem:[#allocation3 + $0xc] sm:$0x1] %v1237
      %v1239 = vld [vmem:[#allocation3 + $0x10] sm:$0xf]
      %v1240 = vsel %vm393, %v1189, %v1239
      %1241 = vst [vmem:[#allocation3 + $0x10] sm:$0xf] %v1240
      %v1242 = vld [vmem:[#allocation3 + $0x14] sm:$0x1]
      %v1243 = vsel %vm306, %v1190, %v1242
      %1244 = vst [vmem:[#allocation3 + $0x14] sm:$0x1] %v1243
      %v1245 = vld [vmem:[#allocation3 + $0x18] sm:$0xf]
      %v1246 = vsel %vm393, %v1197, %v1245
      %1247 = vst [vmem:[#allocation3 + $0x18] sm:$0xf] %v1246
      %v1248 = vld [vmem:[#allocation3 + $0x1c] sm:$0x1]
      %v1249 = vsel %vm306, %v1198, %v1248
      %1250 = vst [vmem:[#allocation3 + $0x1c] sm:$0x1] %v1249
      %v1251 = vld [vmem:[#allocation3 + $0x20] sm:$0xf]
      %v1252 = vsel %vm393, %v1205, %v1251
      %1253 = vst [vmem:[#allocation3 + $0x20] sm:$0xf] %v1252
      %v1254 = vld [vmem:[#allocation3 + $0x24] sm:$0x1]
      %v1255 = vsel %vm306, %v1206, %v1254
      %1256 = vst [vmem:[#allocation3 + $0x24] sm:$0x1] %v1255
      %v1257 = vld [vmem:[#allocation3 + $0x28] sm:$0xf]
      %v1258 = vsel %vm393, %v1213, %v1257
      %1259 = vst [vmem:[#allocation3 + $0x28] sm:$0xf] %v1258
      %v1260 = vld [vmem:[#allocation3 + $0x2c] sm:$0x1]
      %v1261 = vsel %vm306, %v1214, %v1260
      %1262 = vst [vmem:[#allocation3 + $0x2c] sm:$0x1] %v1261
      // Predicated region
      $region65: #{residual_block_forward.1} parent=47 // pred_check
        %p1263 = pneg %p418
      $region66: #{residual_block_forward.1} parent=47 // pred_check_branch
        %1265 = sbr.rel (%p1263) target = $region68
      $region67: #{residual_block_forward.1} parent=47 // pred_region
        %1266 = vst [vmem:[#allocation3] sm:$0xf] 0
        %1267 = vst [vmem:[#allocation3 + $0x4] sm:$0x1] 0
      $region68: #{residual_block_forward.1} parent=47 // pred_fallthru
        _
      // Predicated region
      $region69: #{residual_block_forward.1} parent=47 // pred_check
        %p1268 = pneg %p479
      $region70: #{residual_block_forward.1} parent=47 // pred_check_branch
        %1270 = sbr.rel (%p1268) target = $region72
      $region71: #{residual_block_forward.1} parent=47 // pred_region
        %s1271 = scalar_lea.vmem [#allocation3], 40
        %1272 = vst [vmem:[%s1271] sm:$0xf] 0
        %1273 = vst [vmem:[%s1271 + $0x4] sm:$0x1] 0
      $region72: #{residual_block_forward.1} parent=47 // pred_fallthru
        _
      %v1274 = vld [vmem:[%s329] sm:$0xff]
      %v1275 = vld [vmem:[%s329 + $0x8] sm:$0xff]
      %v1276 = vld [vmem:[%s329 + $0x10] sm:$0xff]
      %v1277 = vld [vmem:[%s329 + $0x18] sm:$0xff]
      %v1278 = vpack.c.bf16 %v1274, %v1274
      %v1279 = vpack.c.bf16 %v1275, %v1275
      %v1280 = vpack.c.bf16 %v1276, %v1276
      %v1281 = vpack.c.bf16 %v1277, %v1277
      %v1282 = vld [vmem:[%s5] sm:$0x3]
      %v1283 = vld [vmem:[%s6] sm:$0x1]
      %v1285 = vlaneseq
      %v1286 = vshrl.u32 %v1285, 7
      %v1287 = vsub.s32 0, %v1286
      %v1288 = vrot.slane %v1283, %v1287
      %v1294 = vunpack.c.l.b16 %v1278
      %v1295 = vunpack.c.l.b16 %v1279
      %v1296 = vunpack.c.l.b16 %v1280
      %v1297 = vunpack.c.l.b16 %v1281
      %v1298 = vpack.c.b16 %v1295, %v1294
      %v1299 = vpack.c.b16 %v1297, %v1296
      %vm1300 = vcmask 31744
      %v1302 = vsel %vm1300, %v1298, 0
      %v1305 = vsel %vm1300, %v1299, 0
      %vm1307 = vcmask 1041408
      %v1309 = vsel %vm1307, %v1282, 0
      %1311 = vmatprep.subr.bf16.mxu0 0
      %1312 = vmatpush1.bf16.msra.mxu0 0
      %1313 = vmatprep.subr.bf16.mxu0 0
      %1314 = vmatpush1.bf16.msra.mxu0 0
      %1315 = vmatprep.subr.bf16.mxu0 0
      %1316 = vmatpush1.bf16.msra.mxu0 0
      %1317 = vmatprep.subr.bf16.mxu0 0
      %1318 = vmatpush1.bf16.msra.mxu0 0
      %1319 = vmatprep.subr.bf16.mxu0 0
      %1320 = vmatpush1.bf16.msra.mxu0 0
      %1321 = vmatprep.subr.bf16.mxu0 0
      %1322 = vmatpush1.bf16.msra.mxu0 0
      %1323 = vmatprep.subr.bf16.mxu0 0
      %1324 = vmatpush1.bf16.msra.mxu0 0
      %1325 = vmatprep.subr.bf16.mxu0 0
      %1326 = vmatpush1.bf16.msra.mxu0 %v1309
      %1327 = vmatprep.subr.bf16.mxu0 0
      %1328 = vmatpush2.bf16.msra.mxu0 0
      %1329 = vmatprep.subr.bf16.mxu0 0
      %1330 = vmatpush2.bf16.msra.mxu0 0
      %1331 = vmatprep.subr.bf16.mxu0 0
      %1332 = vmatpush2.bf16.msra.mxu0 0
      %1333 = vmatprep.subr.bf16.mxu0 0
      %1334 = vmatpush2.bf16.msra.mxu0 0
      %1335 = vmatprep.subr.bf16.mxu0 0
      %1336 = vmatpush2.bf16.msra.mxu0 0
      %1337 = vmatprep.subr.bf16.mxu0 0
      %1338 = vmatpush2.bf16.msra.mxu0 0
      %1339 = vmatprep.subr.bf16.mxu0 0
      %1340 = vmatpush2.bf16.msra.mxu0 0
      %1341 = vmatprep.subr.bf16.mxu0 0
      %1342 = vmatpush2.bf16.msra.mxu0 0
      %1343 = vmatprep.mubr.bf16.mxu0 0
      %1344 = vmatmul.mubr.bf16.gmra.mxu0 %v1302
      %v1345 = vpop.f32.mrf.mxu0
      %v1346 = vadd.f32 %v1288, %v1345
      %v1347 = vpop.f32.mrf.mxu0
      %v1348 = vpop.f32.mrf.mxu0
      %v1349 = vadd.f32 %v1288, %v1348
      %v1350 = vpop.f32.mrf.mxu0
      %1351 = vmatprep.mubr.bf16.mxu0 0
      %1352 = vmatmul.mubr.bf16.gmra.mxu0 %v1305
      %v1353 = vpop.f32.mrf.mxu0
      %v1354 = vadd.f32 %v1288, %v1353
      %v1355 = vpop.f32.mrf.mxu0
      %v1356 = vpop.f32.mrf.mxu0
      %v1357 = vadd.f32 %v1288, %v1356
      %v1358 = vpop.f32.mrf.mxu0
      %1359 = vdwg.mxu0
      %v1360 = vld [vmem:[#allocation3] sm:$0xf]
      %v1361 = vld [vmem:[#allocation3 + $0x8] sm:$0xf]
      %v1362 = vld [vmem:[#allocation3 + $0x10] sm:$0xf]
      %v1363 = vld [vmem:[#allocation3 + $0x18] sm:$0xf]
      %v1364 = vld [vmem:[#allocation3 + $0x4] sm:$0x1]
      %v1365 = vld [vmem:[#allocation3 + $0xc] sm:$0x1]
      %v1366 = vld [vmem:[#allocation3 + $0x14] sm:$0x1]
      %v1367 = vld [vmem:[#allocation3 + $0x1c] sm:$0x1]
      %v1368 = vld [vmem:[#allocation3] sm:$0xe]
      %v1369 = vld [vmem:[#allocation3 + $0x8] sm:$0xe]
      %v1370 = vld [vmem:[#allocation3 + $0x10] sm:$0xe]
      %v1371 = vld [vmem:[#allocation3 + $0x18] sm:$0xe]
      %v1380 = vunpack.c.l.b16 %v1360
      %v1381 = vunpack.c.l.b16 %v1364
      %v1382 = vunpack.c.l.b16 %v1361
      %v1383 = vunpack.c.l.b16 %v1365
      %v1384 = vunpack.c.l.b16 %v1362
      %v1385 = vunpack.c.l.b16 %v1366
      %v1386 = vunpack.c.l.b16 %v1363
      %v1387 = vunpack.c.l.b16 %v1367
      %v1388 = vpack.c.b16 %v1381, %v1380
      %v1389 = vpack.c.b16 %v1383, %v1382
      %v1390 = vpack.c.b16 %v1385, %v1384
      %v1391 = vpack.c.b16 %v1387, %v1386
      %v1393 = vshrl.u32 %v1388, 16
      %v1395 = vshll.u32 %v1388, 16
      %v1397 = vrot.slane %v1395, 1
      %v1398 = vor.u32 %v1393, %v1397
      %v1400 = vshrl.u32 %v1389, 16
      %v1402 = vshll.u32 %v1389, 16
      %v1404 = vrot.slane %v1402, 1
      %v1405 = vor.u32 %v1400, %v1404
      %v1407 = vshrl.u32 %v1390, 16
      %v1409 = vshll.u32 %v1390, 16
      %v1411 = vrot.slane %v1409, 1
      %v1412 = vor.u32 %v1407, %v1411
      %v1414 = vshrl.u32 %v1391, 16
      %v1416 = vshll.u32 %v1391, 16
      %v1418 = vrot.slane %v1416, 1
      %v1419 = vor.u32 %v1414, %v1418
      %v1424 = vunpack.c.l.b16 %v1368
      %v1425 = vunpack.c.l.b16 %v1369
      %v1426 = vunpack.c.l.b16 %v1370
      %v1427 = vunpack.c.l.b16 %v1371
      %v1428 = vpack.c.b16 %v1381, %v1424
      %v1429 = vpack.c.b16 %v1383, %v1425
      %v1430 = vpack.c.b16 %v1385, %v1426
      %v1431 = vpack.c.b16 %v1387, %v1427
      %v1432 = vrot.slane %v1428, 1
      %v1433 = vrot.slane %v1429, 1
      %v1434 = vrot.slane %v1430, 1
      %v1435 = vrot.slane %v1431, 1
      %v1436 = vunpack.c.l.b16 %v1398
      %v1437 = vunpack.c.l.b16 %v1432
      %v1438 = vunpack.c.l.b16 %v1405
      %v1439 = vunpack.c.l.b16 %v1433
      %v1440 = vunpack.c.l.b16 %v1412
      %v1441 = vunpack.c.l.b16 %v1434
      %v1442 = vunpack.c.l.b16 %v1419
      %v1443 = vunpack.c.l.b16 %v1435
      %v1444 = vld [vmem:[%s3] sm:$0xf]
      %v1445 = vld [vmem:[%s3 + $0x4] sm:$0xf]
      %v1446 = vld [vmem:[%s3 + $0x8] sm:$0xf]
      %v1447 = vld [vmem:[%s3 + $0xc] sm:$0xf]
      %v1448 = vld [vmem:[%s3 + $0x10] sm:$0xf]
      %v1449 = vld [vmem:[%s3 + $0x14] sm:$0xf]
      %v1450 = vld [vmem:[%s3 + $0x18] sm:$0xf]
      %v1451 = vld [vmem:[%s3 + $0x1c] sm:$0xf]
      %v1452 = vld [vmem:[%s3 + $0x20] sm:$0xf]
      %v1453 = vld [vmem:[%s3 + $0x24] sm:$0xf]
      %v1454 = vld [vmem:[%s3 + $0x28] sm:$0xf]
      %v1455 = vld [vmem:[%s3 + $0x2c] sm:$0xf]
      %v1456 = vld [vmem:[%s3 + $0x30] sm:$0xf]
      %v1457 = vld [vmem:[%s3 + $0x34] sm:$0xf]
      %v1458 = vld [vmem:[%s3 + $0x38] sm:$0xf]
      %v1459 = vld [vmem:[%s3 + $0x3c] sm:$0xf]
      %v1460 = vld [vmem:[%s3 + $0x40] sm:$0xf]
      %v1461 = vld [vmem:[%s3 + $0x44] sm:$0xf]
      %v1462 = vld [vmem:[%s3 + $0x48] sm:$0xf]
      %v1463 = vld [vmem:[%s3 + $0x4c] sm:$0xf]
      %v1464 = vld [vmem:[%s3 + $0x50] sm:$0xf]
      %v1465 = vld [vmem:[%s3 + $0x54] sm:$0xf]
      %v1466 = vld [vmem:[%s3 + $0x58] sm:$0xf]
      %v1467 = vld [vmem:[%s3 + $0x5c] sm:$0xf]
      %v1468 = vld [vmem:[%s3 + $0x60] sm:$0xf]
      %v1469 = vld [vmem:[%s3 + $0x64] sm:$0xf]
      %v1470 = vld [vmem:[%s3 + $0x68] sm:$0xf]
      %v1471 = vld [vmem:[%s3 + $0x6c] sm:$0xf]
      %v1472 = vld [vmem:[%s3 + $0x70] sm:$0xf]
      %v1473 = vld [vmem:[%s3 + $0x74] sm:$0xf]
      %v1474 = vld [vmem:[%s3 + $0x78] sm:$0xf]
      %v1475 = vld [vmem:[%s3 + $0x7c] sm:$0xf]
      %v1476 = vld [vmem:[%s3 + $0x80] sm:$0xf]
      %v1477 = vld [vmem:[%s3 + $0x84] sm:$0xf]
      %v1478 = vld [vmem:[%s3 + $0x88] sm:$0xf]
      %v1479 = vld [vmem:[%s3 + $0x8c] sm:$0xf]
      %v1480 = vld [vmem:[%s3 + $0x90] sm:$0xf]
      %v1481 = vld [vmem:[%s3 + $0x94] sm:$0xf]
      %v1482 = vld [vmem:[%s3 + $0x98] sm:$0xf]
      %v1483 = vld [vmem:[%s3 + $0x9c] sm:$0xf]
      %v1484 = vld [vmem:[%s3 + $0xa0] sm:$0xf]
      %v1485 = vld [vmem:[%s3 + $0xa4] sm:$0xf]
      %v1486 = vld [vmem:[%s3 + $0xa8] sm:$0xf]
      %v1487 = vld [vmem:[%s3 + $0xac] sm:$0xf]
      %v1488 = vld [vmem:[%s3 + $0xb0] sm:$0xf]
      %v1489 = vld [vmem:[%s3 + $0xb4] sm:$0xf]
      %v1490 = vld [vmem:[%s3 + $0xb8] sm:$0xf]
      %v1491 = vld [vmem:[%s3 + $0xbc] sm:$0xf]
      %v1492 = vpack.c.b16 %v1382, %v1380
      %v1493 = vpack.c.b16 %v1438, %v1436
      %v1494 = vpack.c.b16 %v1439, %v1437
      %v1495 = vpack.c.b16 %v1386, %v1384
      %v1496 = vpack.c.b16 %v1442, %v1440
      %v1497 = vpack.c.b16 %v1443, %v1441
      %v1552 = vunpack.c.l.b16 %v1444
      %v1553 = vunpack.c.l.b16 %v1445
      %v1554 = vunpack.c.l.b16 %v1446
      %v1555 = vunpack.c.l.b16 %v1447
      %v1556 = vunpack.c.l.b16 %v1448
      %v1557 = vunpack.c.l.b16 %v1449
      %v1558 = vunpack.c.l.b16 %v1450
      %v1559 = vunpack.c.l.b16 %v1451
      %v1560 = vunpack.c.l.b16 %v1452
      %v1561 = vunpack.c.l.b16 %v1453
      %v1562 = vunpack.c.l.b16 %v1454
      %v1563 = vunpack.c.l.b16 %v1455
      %v1564 = vunpack.c.l.b16 %v1456
      %v1565 = vunpack.c.l.b16 %v1457
      %v1566 = vunpack.c.l.b16 %v1458
      %v1567 = vunpack.c.l.b16 %v1459
      %v1568 = vunpack.c.l.b16 %v1460
      %v1569 = vunpack.c.l.b16 %v1461
      %v1570 = vunpack.c.l.b16 %v1462
      %v1571 = vunpack.c.l.b16 %v1463
      %v1572 = vunpack.c.l.b16 %v1464
      %v1573 = vunpack.c.l.b16 %v1465
      %v1574 = vunpack.c.l.b16 %v1466
      %v1575 = vunpack.c.l.b16 %v1467
      %v1576 = vunpack.c.l.b16 %v1468
      %v1577 = vunpack.c.l.b16 %v1469
      %v1578 = vunpack.c.l.b16 %v1470
      %v1579 = vunpack.c.l.b16 %v1471
      %v1580 = vunpack.c.l.b16 %v1472
      %v1581 = vunpack.c.l.b16 %v1473
      %v1582 = vunpack.c.l.b16 %v1474
      %v1583 = vunpack.c.l.b16 %v1475
      %v1584 = vunpack.c.l.b16 %v1476
      %v1585 = vunpack.c.l.b16 %v1477
      %v1586 = vunpack.c.l.b16 %v1478
      %v1587 = vunpack.c.l.b16 %v1479
      %v1588 = vunpack.c.l.b16 %v1480
      %v1589 = vunpack.c.l.b16 %v1481
      %v1590 = vunpack.c.l.b16 %v1482
      %v1591 = vunpack.c.l.b16 %v1483
      %v1592 = vunpack.c.l.b16 %v1484
      %v1593 = vunpack.c.l.b16 %v1485
      %v1594 = vunpack.c.l.b16 %v1486
      %v1595 = vunpack.c.l.b16 %v1487
      %v1596 = vunpack.c.l.b16 %v1488
      %v1597 = vunpack.c.l.b16 %v1489
      %v1598 = vunpack.c.l.b16 %v1490
      %v1599 = vunpack.c.l.b16 %v1491
      %v1600 = vpack.c.b16 %v1553, %v1552
      %v1601 = vpack.c.b16 %v1555, %v1554
      %v1602 = vpack.c.b16 %v1557, %v1556
      %v1603 = vpack.c.b16 %v1559, %v1558
      %v1604 = vpack.c.b16 %v1561, %v1560
      %v1605 = vpack.c.b16 %v1563, %v1562
      %v1606 = vpack.c.b16 %v1565, %v1564
      %v1607 = vpack.c.b16 %v1567, %v1566
      %v1608 = vpack.c.b16 %v1569, %v1568
      %v1609 = vpack.c.b16 %v1571, %v1570
      %v1610 = vpack.c.b16 %v1573, %v1572
      %v1611 = vpack.c.b16 %v1575, %v1574
      %v1612 = vpack.c.b16 %v1577, %v1576
      %v1613 = vpack.c.b16 %v1579, %v1578
      %v1614 = vpack.c.b16 %v1581, %v1580
      %v1615 = vpack.c.b16 %v1583, %v1582
      %v1616 = vpack.c.b16 %v1585, %v1584
      %v1617 = vpack.c.b16 %v1587, %v1586
      %v1618 = vpack.c.b16 %v1589, %v1588
      %v1619 = vpack.c.b16 %v1591, %v1590
      %v1620 = vpack.c.b16 %v1593, %v1592
      %v1621 = vpack.c.b16 %v1595, %v1594
      %v1622 = vpack.c.b16 %v1597, %v1596
      %v1623 = vpack.c.b16 %v1599, %v1598
      %1648 = vmatprep.subr.bf16.mxu0 0
      %1649 = vmatpush1.bf16.msra.mxu0 %v1607
      %1650 = vmatprep.subr.bf16.mxu0 0
      %1651 = vmatpush1.bf16.msra.mxu0 %v1606
      %1652 = vmatprep.subr.bf16.mxu0 0
      %1653 = vmatpush1.bf16.msra.mxu0 %v1605
      %1654 = vmatprep.subr.bf16.mxu0 0
      %1655 = vmatpush1.bf16.msra.mxu0 %v1604
      %1656 = vmatprep.subr.bf16.mxu0 0
      %1657 = vmatpush1.bf16.msra.mxu0 %v1603
      %1658 = vmatprep.subr.bf16.mxu0 0
      %1659 = vmatpush1.bf16.msra.mxu0 %v1602
      %1660 = vmatprep.subr.bf16.mxu0 0
      %1661 = vmatpush1.bf16.msra.mxu0 %v1601
      %1662 = vmatprep.subr.bf16.mxu0 0
      %1663 = vmatpush1.bf16.msra.mxu0 %v1600
      %1664 = vmatprep.subr.bf16.mxu0 0
      %1665 = vmatpush2.bf16.msra.mxu0 %v1615
      %1666 = vmatprep.subr.bf16.mxu0 0
      %1667 = vmatpush2.bf16.msra.mxu0 %v1614
      %1668 = vmatprep.subr.bf16.mxu0 0
      %1669 = vmatpush2.bf16.msra.mxu0 %v1613
      %1670 = vmatprep.subr.bf16.mxu0 0
      %1671 = vmatpush2.bf16.msra.mxu0 %v1612
      %1672 = vmatprep.subr.bf16.mxu0 0
      %1673 = vmatpush2.bf16.msra.mxu0 %v1611
      %1674 = vmatprep.subr.bf16.mxu0 0
      %1675 = vmatpush2.bf16.msra.mxu0 %v1610
      %1676 = vmatprep.subr.bf16.mxu0 0
      %1677 = vmatpush2.bf16.msra.mxu0 %v1609
      %1678 = vmatprep.subr.bf16.mxu0 0
      %1679 = vmatpush2.bf16.msra.mxu0 %v1608
      %1680 = vmatprep.mubr.bf16.mxu0 %v1493
      %1681 = vmatmul.mubr.bf16.gmra.mxu0 %v1492
      %v1682 = vpop.f32.mrf.mxu0
      %v1683 = vadd.f32 0.0, %v1682
      %v1684 = vpop.f32.mrf.mxu0
      %v1685 = vpop.f32.mrf.mxu0
      %v1686 = vadd.f32 0.0, %v1685
      %v1687 = vpop.f32.mrf.mxu0
      %1688 = vmatprep.mubr.bf16.mxu0 %v1496
      %1689 = vmatmul.mubr.bf16.gmra.mxu0 %v1495
      %v1690 = vpop.f32.mrf.mxu0
      %v1691 = vadd.f32 0.0, %v1690
      %v1692 = vpop.f32.mrf.mxu0
      %v1693 = vpop.f32.mrf.mxu0
      %v1694 = vadd.f32 0.0, %v1693
      %v1695 = vpop.f32.mrf.mxu0
      %1696 = vdwg.mxu0
      %1697 = vmatprep.subr.bf16.mxu0 0
      %1698 = vmatpush1.bf16.msra.mxu0 %v1623
      %1699 = vmatprep.subr.bf16.mxu0 0
      %1700 = vmatpush1.bf16.msra.mxu0 %v1622
      %1701 = vmatprep.subr.bf16.mxu0 0
      %1702 = vmatpush1.bf16.msra.mxu0 %v1621
      %1703 = vmatprep.subr.bf16.mxu0 0
      %1704 = vmatpush1.bf16.msra.mxu0 %v1620
      %1705 = vmatprep.subr.bf16.mxu0 0
      %1706 = vmatpush1.bf16.msra.mxu0 %v1619
      %1707 = vmatprep.subr.bf16.mxu0 0
      %1708 = vmatpush1.bf16.msra.mxu0 %v1618
      %1709 = vmatprep.subr.bf16.mxu0 0
      %1710 = vmatpush1.bf16.msra.mxu0 %v1617
      %1711 = vmatprep.subr.bf16.mxu0 0
      %1712 = vmatpush1.bf16.msra.mxu0 %v1616
      %1713 = vmatprep.subr.bf16.mxu0 0
      %1714 = vmatpush2.bf16.msra.mxu0 0
      %1715 = vmatprep.subr.bf16.mxu0 0
      %1716 = vmatpush2.bf16.msra.mxu0 0
      %1717 = vmatprep.subr.bf16.mxu0 0
      %1718 = vmatpush2.bf16.msra.mxu0 0
      %1719 = vmatprep.subr.bf16.mxu0 0
      %1720 = vmatpush2.bf16.msra.mxu0 0
      %1721 = vmatprep.subr.bf16.mxu0 0
      %1722 = vmatpush2.bf16.msra.mxu0 0
      %1723 = vmatprep.subr.bf16.mxu0 0
      %1724 = vmatpush2.bf16.msra.mxu0 0
      %1725 = vmatprep.subr.bf16.mxu0 0
      %1726 = vmatpush2.bf16.msra.mxu0 0
      %1727 = vmatprep.subr.bf16.mxu0 0
      %1728 = vmatpush2.bf16.msra.mxu0 0
      %1729 = vmatprep.mubr.bf16.mxu0 0
      %1730 = vmatmul.mubr.bf16.gmra.mxu0 %v1494
      %v1731 = vpop.f32.mrf.mxu0
      %v1732 = vadd.f32 %v1683, %v1731
      %v1733 = vpop.f32.mrf.mxu0
      %v1734 = vpop.f32.mrf.mxu0
      %v1735 = vadd.f32 %v1686, %v1734
      %v1736 = vpop.f32.mrf.mxu0
      %1737 = vmatprep.mubr.bf16.mxu0 0
      %1738 = vmatmul.mubr.bf16.gmra.mxu0 %v1497
      %v1739 = vpop.f32.mrf.mxu0
      %v1740 = vadd.f32 %v1691, %v1739
      %v1741 = vpop.f32.mrf.mxu0
      %v1742 = vpop.f32.mrf.mxu0
      %v1743 = vadd.f32 %v1694, %v1742
      %v1744 = vpop.f32.mrf.mxu0
      %1745 = vdwg.mxu0
      %v1746 = vadd.f32 %v1346, %v1732
      %v1747 = vadd.f32 %v1349, %v1735
      %v1748 = vadd.f32 %v1354, %v1740
      %v1749 = vadd.f32 %v1357, %v1743
      %s1750 = scalar_lea.vmem [#allocation3], 8
      %v1751 = vld [vmem:[%s1750] sm:$0xf]
      %v1752 = vld [vmem:[%s1750 + $0x8] sm:$0xf]
      %v1753 = vld [vmem:[%s1750 + $0x10] sm:$0xf]
      %v1754 = vld [vmem:[%s1750 + $0x18] sm:$0xf]
      %v1755 = vld [vmem:[%s1750 + $0x4] sm:$0x1]
      %v1756 = vld [vmem:[%s1750 + $0xc] sm:$0x1]
      %v1757 = vld [vmem:[%s1750 + $0x14] sm:$0x1]
      %v1758 = vld [vmem:[%s1750 + $0x1c] sm:$0x1]
      %v1759 = vld [vmem:[%s1750] sm:$0xe]
      %v1760 = vld [vmem:[%s1750 + $0x8] sm:$0xe]
      %v1761 = vld [vmem:[%s1750 + $0x10] sm:$0xe]
      %v1762 = vld [vmem:[%s1750 + $0x18] sm:$0xe]
      %v1771 = vunpack.c.l.b16 %v1751
      %v1772 = vunpack.c.l.b16 %v1755
      %v1773 = vunpack.c.l.b16 %v1752
      %v1774 = vunpack.c.l.b16 %v1756
      %v1775 = vunpack.c.l.b16 %v1753
      %v1776 = vunpack.c.l.b16 %v1757
      %v1777 = vunpack.c.l.b16 %v1754
      %v1778 = vunpack.c.l.b16 %v1758
      %v1779 = vpack.c.b16 %v1772, %v1771
      %v1780 = vpack.c.b16 %v1774, %v1773
      %v1781 = vpack.c.b16 %v1776, %v1775
      %v1782 = vpack.c.b16 %v1778, %v1777
      %v1784 = vshrl.u32 %v1779, 16
      %v1786 = vshll.u32 %v1779, 16
      %v1788 = vrot.slane %v1786, 1
      %v1789 = vor.u32 %v1784, %v1788
      %v1791 = vshrl.u32 %v1780, 16
      %v1793 = vshll.u32 %v1780, 16
      %v1795 = vrot.slane %v1793, 1
      %v1796 = vor.u32 %v1791, %v1795
      %v1798 = vshrl.u32 %v1781, 16
      %v1800 = vshll.u32 %v1781, 16
      %v1802 = vrot.slane %v1800, 1
      %v1803 = vor.u32 %v1798, %v1802
      %v1805 = vshrl.u32 %v1782, 16
      %v1807 = vshll.u32 %v1782, 16
      %v1809 = vrot.slane %v1807, 1
      %v1810 = vor.u32 %v1805, %v1809
      %v1815 = vunpack.c.l.b16 %v1759
      %v1816 = vunpack.c.l.b16 %v1760
      %v1817 = vunpack.c.l.b16 %v1761
      %v1818 = vunpack.c.l.b16 %v1762
      %v1819 = vpack.c.b16 %v1772, %v1815
      %v1820 = vpack.c.b16 %v1774, %v1816
      %v1821 = vpack.c.b16 %v1776, %v1817
      %v1822 = vpack.c.b16 %v1778, %v1818
      %v1823 = vrot.slane %v1819, 1
      %v1824 = vrot.slane %v1820, 1
      %v1825 = vrot.slane %v1821, 1
      %v1826 = vrot.slane %v1822, 1
      %v1827 = vunpack.c.l.b16 %v1789
      %v1828 = vunpack.c.l.b16 %v1823
      %v1829 = vunpack.c.l.b16 %v1796
      %v1830 = vunpack.c.l.b16 %v1824
      %v1831 = vunpack.c.l.b16 %v1803
      %v1832 = vunpack.c.l.b16 %v1825
      %v1833 = vunpack.c.l.b16 %v1810
      %v1834 = vunpack.c.l.b16 %v1826
      %s1835 = scalar_lea.vmem %s3, 192
      %v1836 = vld [vmem:[%s1835] sm:$0xf]
      %v1837 = vld [vmem:[%s1835 + $0x4] sm:$0xf]
      %v1838 = vld [vmem:[%s1835 + $0x8] sm:$0xf]
      %v1839 = vld [vmem:[%s1835 + $0xc] sm:$0xf]
      %v1840 = vld [vmem:[%s1835 + $0x10] sm:$0xf]
      %v1841 = vld [vmem:[%s1835 + $0x14] sm:$0xf]
      %v1842 = vld [vmem:[%s1835 + $0x18] sm:$0xf]
      %v1843 = vld [vmem:[%s1835 + $0x1c] sm:$0xf]
      %v1844 = vld [vmem:[%s1835 + $0x20] sm:$0xf]
      %v1845 = vld [vmem:[%s1835 + $0x24] sm:$0xf]
      %v1846 = vld [vmem:[%s1835 + $0x28] sm:$0xf]
      %v1847 = vld [vmem:[%s1835 + $0x2c] sm:$0xf]
      %v1848 = vld [vmem:[%s1835 + $0x30] sm:$0xf]
      %v1849 = vld [vmem:[%s1835 + $0x34] sm:$0xf]
      %v1850 = vld [vmem:[%s1835 + $0x38] sm:$0xf]
      %v1851 = vld [vmem:[%s1835 + $0x3c] sm:$0xf]
      %v1852 = vld [vmem:[%s1835 + $0x40] sm:$0xf]
      %v1853 = vld [vmem:[%s1835 + $0x44] sm:$0xf]
      %v1854 = vld [vmem:[%s1835 + $0x48] sm:$0xf]
      %v1855 = vld [vmem:[%s1835 + $0x4c] sm:$0xf]
      %v1856 = vld [vmem:[%s1835 + $0x50] sm:$0xf]
      %v1857 = vld [vmem:[%s1835 + $0x54] sm:$0xf]
      %v1858 = vld [vmem:[%s1835 + $0x58] sm:$0xf]
      %v1859 = vld [vmem:[%s1835 + $0x5c] sm:$0xf]
      %v1860 = vld [vmem:[%s1835 + $0x60] sm:$0xf]
      %v1861 = vld [vmem:[%s1835 + $0x64] sm:$0xf]
      %v1862 = vld [vmem:[%s1835 + $0x68] sm:$0xf]
      %v1863 = vld [vmem:[%s1835 + $0x6c] sm:$0xf]
      %v1864 = vld [vmem:[%s1835 + $0x70] sm:$0xf]
      %v1865 = vld [vmem:[%s1835 + $0x74] sm:$0xf]
      %v1866 = vld [vmem:[%s1835 + $0x78] sm:$0xf]
      %v1867 = vld [vmem:[%s1835 + $0x7c] sm:$0xf]
      %v1868 = vld [vmem:[%s1835 + $0x80] sm:$0xf]
      %v1869 = vld [vmem:[%s1835 + $0x84] sm:$0xf]
      %v1870 = vld [vmem:[%s1835 + $0x88] sm:$0xf]
      %v1871 = vld [vmem:[%s1835 + $0x8c] sm:$0xf]
      %v1872 = vld [vmem:[%s1835 + $0x90] sm:$0xf]
      %v1873 = vld [vmem:[%s1835 + $0x94] sm:$0xf]
      %v1874 = vld [vmem:[%s1835 + $0x98] sm:$0xf]
      %v1875 = vld [vmem:[%s1835 + $0x9c] sm:$0xf]
      %v1876 = vld [vmem:[%s1835 + $0xa0] sm:$0xf]
      %v1877 = vld [vmem:[%s1835 + $0xa4] sm:$0xf]
      %v1878 = vld [vmem:[%s1835 + $0xa8] sm:$0xf]
      %v1879 = vld [vmem:[%s1835 + $0xac] sm:$0xf]
      %v1880 = vld [vmem:[%s1835 + $0xb0] sm:$0xf]
      %v1881 = vld [vmem:[%s1835 + $0xb4] sm:$0xf]
      %v1882 = vld [vmem:[%s1835 + $0xb8] sm:$0xf]
      %v1883 = vld [vmem:[%s1835 + $0xbc] sm:$0xf]
      %v1884 = vpack.c.b16 %v1773, %v1771
      %v1885 = vpack.c.b16 %v1829, %v1827
      %v1886 = vpack.c.b16 %v1830, %v1828
      %v1887 = vpack.c.b16 %v1777, %v1775
      %v1888 = vpack.c.b16 %v1833, %v1831
      %v1889 = vpack.c.b16 %v1834, %v1832
      %v1944 = vunpack.c.l.b16 %v1836
      %v1945 = vunpack.c.l.b16 %v1837
      %v1946 = vunpack.c.l.b16 %v1838
      %v1947 = vunpack.c.l.b16 %v1839
      %v1948 = vunpack.c.l.b16 %v1840
      %v1949 = vunpack.c.l.b16 %v1841
      %v1950 = vunpack.c.l.b16 %v1842
      %v1951 = vunpack.c.l.b16 %v1843
      %v1952 = vunpack.c.l.b16 %v1844
      %v1953 = vunpack.c.l.b16 %v1845
      %v1954 = vunpack.c.l.b16 %v1846
      %v1955 = vunpack.c.l.b16 %v1847
      %v1956 = vunpack.c.l.b16 %v1848
      %v1957 = vunpack.c.l.b16 %v1849
      %v1958 = vunpack.c.l.b16 %v1850
      %v1959 = vunpack.c.l.b16 %v1851
      %v1960 = vunpack.c.l.b16 %v1852
      %v1961 = vunpack.c.l.b16 %v1853
      %v1962 = vunpack.c.l.b16 %v1854
      %v1963 = vunpack.c.l.b16 %v1855
      %v1964 = vunpack.c.l.b16 %v1856
      %v1965 = vunpack.c.l.b16 %v1857
      %v1966 = vunpack.c.l.b16 %v1858
      %v1967 = vunpack.c.l.b16 %v1859
      %v1968 = vunpack.c.l.b16 %v1860
      %v1969 = vunpack.c.l.b16 %v1861
      %v1970 = vunpack.c.l.b16 %v1862
      %v1971 = vunpack.c.l.b16 %v1863
      %v1972 = vunpack.c.l.b16 %v1864
      %v1973 = vunpack.c.l.b16 %v1865
      %v1974 = vunpack.c.l.b16 %v1866
      %v1975 = vunpack.c.l.b16 %v1867
      %v1976 = vunpack.c.l.b16 %v1868
      %v1977 = vunpack.c.l.b16 %v1869
      %v1978 = vunpack.c.l.b16 %v1870
      %v1979 = vunpack.c.l.b16 %v1871
      %v1980 = vunpack.c.l.b16 %v1872
      %v1981 = vunpack.c.l.b16 %v1873
      %v1982 = vunpack.c.l.b16 %v1874
      %v1983 = vunpack.c.l.b16 %v1875
      %v1984 = vunpack.c.l.b16 %v1876
      %v1985 = vunpack.c.l.b16 %v1877
      %v1986 = vunpack.c.l.b16 %v1878
      %v1987 = vunpack.c.l.b16 %v1879
      %v1988 = vunpack.c.l.b16 %v1880
      %v1989 = vunpack.c.l.b16 %v1881
      %v1990 = vunpack.c.l.b16 %v1882
      %v1991 = vunpack.c.l.b16 %v1883
      %v1992 = vpack.c.b16 %v1945, %v1944
      %v1993 = vpack.c.b16 %v1947, %v1946
      %v1994 = vpack.c.b16 %v1949, %v1948
      %v1995 = vpack.c.b16 %v1951, %v1950
      %v1996 = vpack.c.b16 %v1953, %v1952
      %v1997 = vpack.c.b16 %v1955, %v1954
      %v1998 = vpack.c.b16 %v1957, %v1956
      %v1999 = vpack.c.b16 %v1959, %v1958
      %v2000 = vpack.c.b16 %v1961, %v1960
      %v2001 = vpack.c.b16 %v1963, %v1962
      %v2002 = vpack.c.b16 %v1965, %v1964
      %v2003 = vpack.c.b16 %v1967, %v1966
      %v2004 = vpack.c.b16 %v1969, %v1968
      %v2005 = vpack.c.b16 %v1971, %v1970
      %v2006 = vpack.c.b16 %v1973, %v1972
      %v2007 = vpack.c.b16 %v1975, %v1974
      %v2008 = vpack.c.b16 %v1977, %v1976
      %v2009 = vpack.c.b16 %v1979, %v1978
      %v2010 = vpack.c.b16 %v1981, %v1980
      %v2011 = vpack.c.b16 %v1983, %v1982
      %v2012 = vpack.c.b16 %v1985, %v1984
      %v2013 = vpack.c.b16 %v1987, %v1986
      %v2014 = vpack.c.b16 %v1989, %v1988
      %v2015 = vpack.c.b16 %v1991, %v1990
      %2040 = vmatprep.subr.bf16.mxu0 0
      %2041 = vmatpush1.bf16.msra.mxu0 %v1999
      %2042 = vmatprep.subr.bf16.mxu0 0
      %2043 = vmatpush1.bf16.msra.mxu0 %v1998
      %2044 = vmatprep.subr.bf16.mxu0 0
      %2045 = vmatpush1.bf16.msra.mxu0 %v1997
      %2046 = vmatprep.subr.bf16.mxu0 0
      %2047 = vmatpush1.bf16.msra.mxu0 %v1996
      %2048 = vmatprep.subr.bf16.mxu0 0
      %2049 = vmatpush1.bf16.msra.mxu0 %v1995
      %2050 = vmatprep.subr.bf16.mxu0 0
      %2051 = vmatpush1.bf16.msra.mxu0 %v1994
      %2052 = vmatprep.subr.bf16.mxu0 0
      %2053 = vmatpush1.bf16.msra.mxu0 %v1993
      %2054 = vmatprep.subr.bf16.mxu0 0
      %2055 = vmatpush1.bf16.msra.mxu0 %v1992
      %2056 = vmatprep.subr.bf16.mxu0 0
      %2057 = vmatpush2.bf16.msra.mxu0 %v2007
      %2058 = vmatprep.subr.bf16.mxu0 0
      %2059 = vmatpush2.bf16.msra.mxu0 %v2006
      %2060 = vmatprep.subr.bf16.mxu0 0
      %2061 = vmatpush2.bf16.msra.mxu0 %v2005
      %2062 = vmatprep.subr.bf16.mxu0 0
      %2063 = vmatpush2.bf16.msra.mxu0 %v2004
      %2064 = vmatprep.subr.bf16.mxu0 0
      %2065 = vmatpush2.bf16.msra.mxu0 %v2003
      %2066 = vmatprep.subr.bf16.mxu0 0
      %2067 = vmatpush2.bf16.msra.mxu0 %v2002
      %2068 = vmatprep.subr.bf16.mxu0 0
      %2069 = vmatpush2.bf16.msra.mxu0 %v2001
      %2070 = vmatprep.subr.bf16.mxu0 0
      %2071 = vmatpush2.bf16.msra.mxu0 %v2000
      %2072 = vmatprep.mubr.bf16.mxu0 %v1885
      %2073 = vmatmul.mubr.bf16.gmra.mxu0 %v1884
      %v2074 = vpop.f32.mrf.mxu0
      %v2075 = vadd.f32 0.0, %v2074
      %v2076 = vpop.f32.mrf.mxu0
      %v2077 = vpop.f32.mrf.mxu0
      %v2078 = vadd.f32 0.0, %v2077
      %v2079 = vpop.f32.mrf.mxu0
      %2080 = vmatprep.mubr.bf16.mxu0 %v1888
      %2081 = vmatmul.mubr.bf16.gmra.mxu0 %v1887
      %v2082 = vpop.f32.mrf.mxu0
      %v2083 = vadd.f32 0.0, %v2082
      %v2084 = vpop.f32.mrf.mxu0
      %v2085 = vpop.f32.mrf.mxu0
      %v2086 = vadd.f32 0.0, %v2085
      %v2087 = vpop.f32.mrf.mxu0
      %2088 = vdwg.mxu0
      %2089 = vmatprep.subr.bf16.mxu0 0
      %2090 = vmatpush1.bf16.msra.mxu0 %v2015
      %2091 = vmatprep.subr.bf16.mxu0 0
      %2092 = vmatpush1.bf16.msra.mxu0 %v2014
      %2093 = vmatprep.subr.bf16.mxu0 0
      %2094 = vmatpush1.bf16.msra.mxu0 %v2013
      %2095 = vmatprep.subr.bf16.mxu0 0
      %2096 = vmatpush1.bf16.msra.mxu0 %v2012
      %2097 = vmatprep.subr.bf16.mxu0 0
      %2098 = vmatpush1.bf16.msra.mxu0 %v2011
      %2099 = vmatprep.subr.bf16.mxu0 0
      %2100 = vmatpush1.bf16.msra.mxu0 %v2010
      %2101 = vmatprep.subr.bf16.mxu0 0
      %2102 = vmatpush1.bf16.msra.mxu0 %v2009
      %2103 = vmatprep.subr.bf16.mxu0 0
      %2104 = vmatpush1.bf16.msra.mxu0 %v2008
      %2105 = vmatprep.subr.bf16.mxu0 0
      %2106 = vmatpush2.bf16.msra.mxu0 0
      %2107 = vmatprep.subr.bf16.mxu0 0
      %2108 = vmatpush2.bf16.msra.mxu0 0
      %2109 = vmatprep.subr.bf16.mxu0 0
      %2110 = vmatpush2.bf16.msra.mxu0 0
      %2111 = vmatprep.subr.bf16.mxu0 0
      %2112 = vmatpush2.bf16.msra.mxu0 0
      %2113 = vmatprep.subr.bf16.mxu0 0
      %2114 = vmatpush2.bf16.msra.mxu0 0
      %2115 = vmatprep.subr.bf16.mxu0 0
      %2116 = vmatpush2.bf16.msra.mxu0 0
      %2117 = vmatprep.subr.bf16.mxu0 0
      %2118 = vmatpush2.bf16.msra.mxu0 0
      %2119 = vmatprep.subr.bf16.mxu0 0
      %2120 = vmatpush2.bf16.msra.mxu0 0
      %2121 = vmatprep.mubr.bf16.mxu0 0
      %2122 = vmatmul.mubr.bf16.gmra.mxu0 %v1886
      %v2123 = vpop.f32.mrf.mxu0
      %v2124 = vadd.f32 %v2075, %v2123
      %v2125 = vpop.f32.mrf.mxu0
      %v2126 = vpop.f32.mrf.mxu0
      %v2127 = vadd.f32 %v2078, %v2126
      %v2128 = vpop.f32.mrf.mxu0
      %2129 = vmatprep.mubr.bf16.mxu0 0
      %2130 = vmatmul.mubr.bf16.gmra.mxu0 %v1889
      %v2131 = vpop.f32.mrf.mxu0
      %v2132 = vadd.f32 %v2083, %v2131
      %v2133 = vpop.f32.mrf.mxu0
      %v2134 = vpop.f32.mrf.mxu0
      %v2135 = vadd.f32 %v2086, %v2134
      %v2136 = vpop.f32.mrf.mxu0
      %2137 = vdwg.mxu0
      %v2138 = vadd.f32 %v1746, %v2124
      %v2139 = vadd.f32 %v1747, %v2127
      %v2140 = vadd.f32 %v1748, %v2132
      %v2141 = vadd.f32 %v1749, %v2135
      %s2142 = scalar_lea.vmem [#allocation3], 16
      %v2143 = vld [vmem:[%s2142] sm:$0xf]
      %v2144 = vld [vmem:[%s2142 + $0x8] sm:$0xf]
      %v2145 = vld [vmem:[%s2142 + $0x10] sm:$0xf]
      %v2146 = vld [vmem:[%s2142 + $0x18] sm:$0xf]
      %v2147 = vld [vmem:[%s2142 + $0x4] sm:$0x1]
      %v2148 = vld [vmem:[%s2142 + $0xc] sm:$0x1]
      %v2149 = vld [vmem:[%s2142 + $0x14] sm:$0x1]
      %v2150 = vld [vmem:[%s2142 + $0x1c] sm:$0x1]
      %v2151 = vld [vmem:[%s2142] sm:$0xe]
      %v2152 = vld [vmem:[%s2142 + $0x8] sm:$0xe]
      %v2153 = vld [vmem:[%s2142 + $0x10] sm:$0xe]
      %v2154 = vld [vmem:[%s2142 + $0x18] sm:$0xe]
      %v2163 = vunpack.c.l.b16 %v2143
      %v2164 = vunpack.c.l.b16 %v2147
      %v2165 = vunpack.c.l.b16 %v2144
      %v2166 = vunpack.c.l.b16 %v2148
      %v2167 = vunpack.c.l.b16 %v2145
      %v2168 = vunpack.c.l.b16 %v2149
      %v2169 = vunpack.c.l.b16 %v2146
      %v2170 = vunpack.c.l.b16 %v2150
      %v2171 = vpack.c.b16 %v2164, %v2163
      %v2172 = vpack.c.b16 %v2166, %v2165
      %v2173 = vpack.c.b16 %v2168, %v2167
      %v2174 = vpack.c.b16 %v2170, %v2169
      %v2176 = vshrl.u32 %v2171, 16
      %v2178 = vshll.u32 %v2171, 16
      %v2180 = vrot.slane %v2178, 1
      %v2181 = vor.u32 %v2176, %v2180
      %v2183 = vshrl.u32 %v2172, 16
      %v2185 = vshll.u32 %v2172, 16
      %v2187 = vrot.slane %v2185, 1
      %v2188 = vor.u32 %v2183, %v2187
      %v2190 = vshrl.u32 %v2173, 16
      %v2192 = vshll.u32 %v2173, 16
      %v2194 = vrot.slane %v2192, 1
      %v2195 = vor.u32 %v2190, %v2194
      %v2197 = vshrl.u32 %v2174, 16
      %v2199 = vshll.u32 %v2174, 16
      %v2201 = vrot.slane %v2199, 1
      %v2202 = vor.u32 %v2197, %v2201
      %v2207 = vunpack.c.l.b16 %v2151
      %v2208 = vunpack.c.l.b16 %v2152
      %v2209 = vunpack.c.l.b16 %v2153
      %v2210 = vunpack.c.l.b16 %v2154
      %v2211 = vpack.c.b16 %v2164, %v2207
      %v2212 = vpack.c.b16 %v2166, %v2208
      %v2213 = vpack.c.b16 %v2168, %v2209
      %v2214 = vpack.c.b16 %v2170, %v2210
      %v2215 = vrot.slane %v2211, 1
      %v2216 = vrot.slane %v2212, 1
      %v2217 = vrot.slane %v2213, 1
      %v2218 = vrot.slane %v2214, 1
      %v2219 = vunpack.c.l.b16 %v2181
      %v2220 = vunpack.c.l.b16 %v2215
      %v2221 = vunpack.c.l.b16 %v2188
      %v2222 = vunpack.c.l.b16 %v2216
      %v2223 = vunpack.c.l.b16 %v2195
      %v2224 = vunpack.c.l.b16 %v2217
      %v2225 = vunpack.c.l.b16 %v2202
      %v2226 = vunpack.c.l.b16 %v2218
      %s2227 = scalar_lea.vmem %s3, 384
      %v2228 = vld [vmem:[%s2227] sm:$0xf]
      %v2229 = vld [vmem:[%s2227 + $0x4] sm:$0xf]
      %v2230 = vld [vmem:[%s2227 + $0x8] sm:$0xf]
      %v2231 = vld [vmem:[%s2227 + $0xc] sm:$0xf]
      %v2232 = vld [vmem:[%s2227 + $0x10] sm:$0xf]
      %v2233 = vld [vmem:[%s2227 + $0x14] sm:$0xf]
      %v2234 = vld [vmem:[%s2227 + $0x18] sm:$0xf]
      %v2235 = vld [vmem:[%s2227 + $0x1c] sm:$0xf]
      %v2236 = vld [vmem:[%s2227 + $0x20] sm:$0xf]
      %v2237 = vld [vmem:[%s2227 + $0x24] sm:$0xf]
      %v2238 = vld [vmem:[%s2227 + $0x28] sm:$0xf]
      %v2239 = vld [vmem:[%s2227 + $0x2c] sm:$0xf]
      %v2240 = vld [vmem:[%s2227 + $0x30] sm:$0xf]
      %v2241 = vld [vmem:[%s2227 + $0x34] sm:$0xf]
      %v2242 = vld [vmem:[%s2227 + $0x38] sm:$0xf]
      %v2243 = vld [vmem:[%s2227 + $0x3c] sm:$0xf]
      %v2244 = vld [vmem:[%s2227 + $0x40] sm:$0xf]
      %v2245 = vld [vmem:[%s2227 + $0x44] sm:$0xf]
      %v2246 = vld [vmem:[%s2227 + $0x48] sm:$0xf]
      %v2247 = vld [vmem:[%s2227 + $0x4c] sm:$0xf]
      %v2248 = vld [vmem:[%s2227 + $0x50] sm:$0xf]
      %v2249 = vld [vmem:[%s2227 + $0x54] sm:$0xf]
      %v2250 = vld [vmem:[%s2227 + $0x58] sm:$0xf]
      %v2251 = vld [vmem:[%s2227 + $0x5c] sm:$0xf]
      %v2252 = vld [vmem:[%s2227 + $0x60] sm:$0xf]
      %v2253 = vld [vmem:[%s2227 + $0x64] sm:$0xf]
      %v2254 = vld [vmem:[%s2227 + $0x68] sm:$0xf]
      %v2255 = vld [vmem:[%s2227 + $0x6c] sm:$0xf]
      %v2256 = vld [vmem:[%s2227 + $0x70] sm:$0xf]
      %v2257 = vld [vmem:[%s2227 + $0x74] sm:$0xf]
      %v2258 = vld [vmem:[%s2227 + $0x78] sm:$0xf]
      %v2259 = vld [vmem:[%s2227 + $0x7c] sm:$0xf]
      %v2260 = vld [vmem:[%s2227 + $0x80] sm:$0xf]
      %v2261 = vld [vmem:[%s2227 + $0x84] sm:$0xf]
      %v2262 = vld [vmem:[%s2227 + $0x88] sm:$0xf]
      %v2263 = vld [vmem:[%s2227 + $0x8c] sm:$0xf]
      %v2264 = vld [vmem:[%s2227 + $0x90] sm:$0xf]
      %v2265 = vld [vmem:[%s2227 + $0x94] sm:$0xf]
      %v2266 = vld [vmem:[%s2227 + $0x98] sm:$0xf]
      %v2267 = vld [vmem:[%s2227 + $0x9c] sm:$0xf]
      %v2268 = vld [vmem:[%s2227 + $0xa0] sm:$0xf]
      %v2269 = vld [vmem:[%s2227 + $0xa4] sm:$0xf]
      %v2270 = vld [vmem:[%s2227 + $0xa8] sm:$0xf]
      %v2271 = vld [vmem:[%s2227 + $0xac] sm:$0xf]
      %v2272 = vld [vmem:[%s2227 + $0xb0] sm:$0xf]
      %v2273 = vld [vmem:[%s2227 + $0xb4] sm:$0xf]
      %v2274 = vld [vmem:[%s2227 + $0xb8] sm:$0xf]
      %v2275 = vld [vmem:[%s2227 + $0xbc] sm:$0xf]
      %v2276 = vpack.c.b16 %v2165, %v2163
      %v2277 = vpack.c.b16 %v2221, %v2219
      %v2278 = vpack.c.b16 %v2222, %v2220
      %v2279 = vpack.c.b16 %v2169, %v2167
      %v2280 = vpack.c.b16 %v2225, %v2223
      %v2281 = vpack.c.b16 %v2226, %v2224
      %v2336 = vunpack.c.l.b16 %v2228
      %v2337 = vunpack.c.l.b16 %v2229
      %v2338 = vunpack.c.l.b16 %v2230
      %v2339 = vunpack.c.l.b16 %v2231
      %v2340 = vunpack.c.l.b16 %v2232
      %v2341 = vunpack.c.l.b16 %v2233
      %v2342 = vunpack.c.l.b16 %v2234
      %v2343 = vunpack.c.l.b16 %v2235
      %v2344 = vunpack.c.l.b16 %v2236
      %v2345 = vunpack.c.l.b16 %v2237
      %v2346 = vunpack.c.l.b16 %v2238
      %v2347 = vunpack.c.l.b16 %v2239
      %v2348 = vunpack.c.l.b16 %v2240
      %v2349 = vunpack.c.l.b16 %v2241
      %v2350 = vunpack.c.l.b16 %v2242
      %v2351 = vunpack.c.l.b16 %v2243
      %v2352 = vunpack.c.l.b16 %v2244
      %v2353 = vunpack.c.l.b16 %v2245
      %v2354 = vunpack.c.l.b16 %v2246
      %v2355 = vunpack.c.l.b16 %v2247
      %v2356 = vunpack.c.l.b16 %v2248
      %v2357 = vunpack.c.l.b16 %v2249
      %v2358 = vunpack.c.l.b16 %v2250
      %v2359 = vunpack.c.l.b16 %v2251
      %v2360 = vunpack.c.l.b16 %v2252
      %v2361 = vunpack.c.l.b16 %v2253
      %v2362 = vunpack.c.l.b16 %v2254
      %v2363 = vunpack.c.l.b16 %v2255
      %v2364 = vunpack.c.l.b16 %v2256
      %v2365 = vunpack.c.l.b16 %v2257
      %v2366 = vunpack.c.l.b16 %v2258
      %v2367 = vunpack.c.l.b16 %v2259
      %v2368 = vunpack.c.l.b16 %v2260
      %v2369 = vunpack.c.l.b16 %v2261
      %v2370 = vunpack.c.l.b16 %v2262
      %v2371 = vunpack.c.l.b16 %v2263
      %v2372 = vunpack.c.l.b16 %v2264
      %v2373 = vunpack.c.l.b16 %v2265
      %v2374 = vunpack.c.l.b16 %v2266
      %v2375 = vunpack.c.l.b16 %v2267
      %v2376 = vunpack.c.l.b16 %v2268
      %v2377 = vunpack.c.l.b16 %v2269
      %v2378 = vunpack.c.l.b16 %v2270
      %v2379 = vunpack.c.l.b16 %v2271
      %v2380 = vunpack.c.l.b16 %v2272
      %v2381 = vunpack.c.l.b16 %v2273
      %v2382 = vunpack.c.l.b16 %v2274
      %v2383 = vunpack.c.l.b16 %v2275
      %v2384 = vpack.c.b16 %v2337, %v2336
      %v2385 = vpack.c.b16 %v2339, %v2338
      %v2386 = vpack.c.b16 %v2341, %v2340
      %v2387 = vpack.c.b16 %v2343, %v2342
      %v2388 = vpack.c.b16 %v2345, %v2344
      %v2389 = vpack.c.b16 %v2347, %v2346
      %v2390 = vpack.c.b16 %v2349, %v2348
      %v2391 = vpack.c.b16 %v2351, %v2350
      %v2392 = vpack.c.b16 %v2353, %v2352
      %v2393 = vpack.c.b16 %v2355, %v2354
      %v2394 = vpack.c.b16 %v2357, %v2356
      %v2395 = vpack.c.b16 %v2359, %v2358
      %v2396 = vpack.c.b16 %v2361, %v2360
      %v2397 = vpack.c.b16 %v2363, %v2362
      %v2398 = vpack.c.b16 %v2365, %v2364
      %v2399 = vpack.c.b16 %v2367, %v2366
      %v2400 = vpack.c.b16 %v2369, %v2368
      %v2401 = vpack.c.b16 %v2371, %v2370
      %v2402 = vpack.c.b16 %v2373, %v2372
      %v2403 = vpack.c.b16 %v2375, %v2374
      %v2404 = vpack.c.b16 %v2377, %v2376
      %v2405 = vpack.c.b16 %v2379, %v2378
      %v2406 = vpack.c.b16 %v2381, %v2380
      %v2407 = vpack.c.b16 %v2383, %v2382
      %2432 = vmatprep.subr.bf16.mxu0 0
      %2433 = vmatpush1.bf16.msra.mxu0 %v2391
      %2434 = vmatprep.subr.bf16.mxu0 0
      %2435 = vmatpush1.bf16.msra.mxu0 %v2390
      %2436 = vmatprep.subr.bf16.mxu0 0
      %2437 = vmatpush1.bf16.msra.mxu0 %v2389
      %2438 = vmatprep.subr.bf16.mxu0 0
      %2439 = vmatpush1.bf16.msra.mxu0 %v2388
      %2440 = vmatprep.subr.bf16.mxu0 0
      %2441 = vmatpush1.bf16.msra.mxu0 %v2387
      %2442 = vmatprep.subr.bf16.mxu0 0
      %2443 = vmatpush1.bf16.msra.mxu0 %v2386
      %2444 = vmatprep.subr.bf16.mxu0 0
      %2445 = vmatpush1.bf16.msra.mxu0 %v2385
      %2446 = vmatprep.subr.bf16.mxu0 0
      %2447 = vmatpush1.bf16.msra.mxu0 %v2384
      %2448 = vmatprep.subr.bf16.mxu0 0
      %2449 = vmatpush2.bf16.msra.mxu0 %v2399
      %2450 = vmatprep.subr.bf16.mxu0 0
      %2451 = vmatpush2.bf16.msra.mxu0 %v2398
      %2452 = vmatprep.subr.bf16.mxu0 0
      %2453 = vmatpush2.bf16.msra.mxu0 %v2397
      %2454 = vmatprep.subr.bf16.mxu0 0
      %2455 = vmatpush2.bf16.msra.mxu0 %v2396
      %2456 = vmatprep.subr.bf16.mxu0 0
      %2457 = vmatpush2.bf16.msra.mxu0 %v2395
      %2458 = vmatprep.subr.bf16.mxu0 0
      %2459 = vmatpush2.bf16.msra.mxu0 %v2394
      %2460 = vmatprep.subr.bf16.mxu0 0
      %2461 = vmatpush2.bf16.msra.mxu0 %v2393
      %2462 = vmatprep.subr.bf16.mxu0 0
      %2463 = vmatpush2.bf16.msra.mxu0 %v2392
      %2464 = vmatprep.mubr.bf16.mxu0 %v2277
      %2465 = vmatmul.mubr.bf16.gmra.mxu0 %v2276
      %v2466 = vpop.f32.mrf.mxu0
      %v2467 = vadd.f32 0.0, %v2466
      %v2468 = vpop.f32.mrf.mxu0
      %v2469 = vpop.f32.mrf.mxu0
      %v2470 = vadd.f32 0.0, %v2469
      %v2471 = vpop.f32.mrf.mxu0
      %2472 = vmatprep.mubr.bf16.mxu0 %v2280
      %2473 = vmatmul.mubr.bf16.gmra.mxu0 %v2279
      %v2474 = vpop.f32.mrf.mxu0
      %v2475 = vadd.f32 0.0, %v2474
      %v2476 = vpop.f32.mrf.mxu0
      %v2477 = vpop.f32.mrf.mxu0
      %v2478 = vadd.f32 0.0, %v2477
      %v2479 = vpop.f32.mrf.mxu0
      %2480 = vdwg.mxu0
      %2481 = vmatprep.subr.bf16.mxu0 0
      %2482 = vmatpush1.bf16.msra.mxu0 %v2407
      %2483 = vmatprep.subr.bf16.mxu0 0
      %2484 = vmatpush1.bf16.msra.mxu0 %v2406
      %2485 = vmatprep.subr.bf16.mxu0 0
      %2486 = vmatpush1.bf16.msra.mxu0 %v2405
      %2487 = vmatprep.subr.bf16.mxu0 0
      %2488 = vmatpush1.bf16.msra.mxu0 %v2404
      %2489 = vmatprep.subr.bf16.mxu0 0
      %2490 = vmatpush1.bf16.msra.mxu0 %v2403
      %2491 = vmatprep.subr.bf16.mxu0 0
      %2492 = vmatpush1.bf16.msra.mxu0 %v2402
      %2493 = vmatprep.subr.bf16.mxu0 0
      %2494 = vmatpush1.bf16.msra.mxu0 %v2401
      %2495 = vmatprep.subr.bf16.mxu0 0
      %2496 = vmatpush1.bf16.msra.mxu0 %v2400
      %2497 = vmatprep.subr.bf16.mxu0 0
      %2498 = vmatpush2.bf16.msra.mxu0 0
      %2499 = vmatprep.subr.bf16.mxu0 0
      %2500 = vmatpush2.bf16.msra.mxu0 0
      %2501 = vmatprep.subr.bf16.mxu0 0
      %2502 = vmatpush2.bf16.msra.mxu0 0
      %2503 = vmatprep.subr.bf16.mxu0 0
      %2504 = vmatpush2.bf16.msra.mxu0 0
      %2505 = vmatprep.subr.bf16.mxu0 0
      %2506 = vmatpush2.bf16.msra.mxu0 0
      %2507 = vmatprep.subr.bf16.mxu0 0
      %2508 = vmatpush2.bf16.msra.mxu0 0
      %2509 = vmatprep.subr.bf16.mxu0 0
      %2510 = vmatpush2.bf16.msra.mxu0 0
      %2511 = vmatprep.subr.bf16.mxu0 0
      %2512 = vmatpush2.bf16.msra.mxu0 0
      %2513 = vmatprep.mubr.bf16.mxu0 0
      %2514 = vmatmul.mubr.bf16.gmra.mxu0 %v2278
      %v2515 = vpop.f32.mrf.mxu0
      %v2516 = vadd.f32 %v2467, %v2515
      %v2517 = vpop.f32.mrf.mxu0
      %v2518 = vpop.f32.mrf.mxu0
      %v2519 = vadd.f32 %v2470, %v2518
      %v2520 = vpop.f32.mrf.mxu0
      %2521 = vmatprep.mubr.bf16.mxu0 0
      %2522 = vmatmul.mubr.bf16.gmra.mxu0 %v2281
      %v2523 = vpop.f32.mrf.mxu0
      %v2524 = vadd.f32 %v2475, %v2523
      %v2525 = vpop.f32.mrf.mxu0
      %v2526 = vpop.f32.mrf.mxu0
      %v2527 = vadd.f32 %v2478, %v2526
      %v2528 = vpop.f32.mrf.mxu0
      %2529 = vdwg.mxu0
      %v2530 = vadd.f32 %v2138, %v2516
      %v2531 = vadd.f32 %v2139, %v2519
      %v2532 = vadd.f32 %v2140, %v2524
      %v2533 = vadd.f32 %v2141, %v2527
      %v2534 = vld [vmem:[%s4] sm:$0x1]
      %v2536 = vlaneseq
      %v2537 = vshrl.u32 %v2536, 7
      %v2538 = vsub.s32 0, %v2537
      %v2539 = vrot.slane %v2534, %v2538
      %v2541 = vadd.f32 %v2530, %v2539
      %v2542 = vadd.f32 %v2531, %v2539
      %v2543 = vadd.f32 %v2532, %v2539
      %v2544 = vadd.f32 %v2533, %v2539
      %v2545 = vmax.f32 %v2541, 0.0
      %v2546 = vmax.f32 %v2542, 0.0
      %v2547 = vmax.f32 %v2543, 0.0
      %v2548 = vmax.f32 %v2544, 0.0
      %2549 = vst [vmem:[%s300] sm:$0xff] %v2545
      %2550 = vst [vmem:[%s300 + $0x8] sm:$0xff] %v2546
      %2551 = vst [vmem:[%s300 + $0x10] sm:$0xff] %v2547
      %2552 = vst [vmem:[%s300 + $0x18] sm:$0xff] %v2548
      %s2553 = smul.u32 4, %s23
      %p2554 = scmp.lt.s32.totalorder %s22, 1
      %s2555 = scalar_select %p2554, %s22, 1
      %p2556 = scmp.lt.s32.totalorder %s2553, 7
      %s2557 = scalar_select %p2556, %s2553, 7
      %s2558 = smul.addr %s2555, 8
      %s2559 = sadd.s32 %s2557, %s2558
      %s2560 = smul.addr %s2559, 8
      %s2561 = scalar_lea.vmem %s7, %s2560
      // Predicated region
      $region73: #{residual_block_forward.1} parent=47 // pred_check
        %p2562 = pneg %p202
      $region74: #{residual_block_forward.1} parent=47 // pred_check_branch
        %2564 = sbr.rel (%p2562) target = $region76
      $region75: #{residual_block_forward.1} parent=47 // pred_region
        %s2565 = smul.u32 4, %s23
      $region76: #{residual_block_forward.1} parent=47 // pred_fallthru
        _
    $region48: #{residual_block_forward.1} parent=5 // pred_fallthru
      _
    %p2566 = scmp.le.s32.totalorder 2, %s13
    // Predicated region
    $region77: #{residual_block_forward.1} parent=5 // pred_check
      %p2567 = pneg %p2566
    $region78: #{residual_block_forward.1} parent=5 // pred_check_branch
      %2569 = sbr.rel (%p2567) target = $region80
    $region79: #{residual_block_forward.1} parent=5 // pred_region
      %s2570 = ssub.s32 %s13, 2
      // Predicated region
      $region81: #{residual_block_forward.1} parent=79 // pred_check
        %p2571 = pneg %p208
      $region82: #{residual_block_forward.1} parent=79 // pred_check_branch
        %2573 = sbr.rel (%p2571) target = $region84
      $region83: #{residual_block_forward.1} parent=79 // pred_region
        %s2574 = smul.u32 4, %s25
        %p2575 = scmp.lt.s32.totalorder %s24, 1
        %s2576 = scalar_select %p2575, %s24, 1
        %p2577 = scmp.lt.s32.totalorder %s2574, 7
        %s2578 = scalar_select %p2577, %s2574, 7
        %s2579 = smul.addr %s2576, 8
        %s2580 = sadd.s32 %s2578, %s2579
        %s2581 = smul.addr %s2580, 8
        %s2582 = scalar_lea.vmem %s7, %s2581
      $region84: #{residual_block_forward.1} parent=79 // pred_fallthru
        _
    $region80: #{residual_block_forward.1} parent=5 // pred_fallthru
      _
  $region6: #{residual_block_forward.1} parent=0 // loop_footer
    %s17 = sadd.s32 1, %s13
  $region7: #{residual_block_forward.1} parent=0 // loop_footer_branch
    %12 = sbr.rel target = $region3
  $region8: #{residual_block_forward.1} parent=0 // loop_exit
    _

</llo_original>
